<compile_context>
chip_gen: v5e
topology: v5e:2x2
jax: 0.10.0
libtpu: 0.0.40
codegen_flags: <defaults>
</compile_context>

<pallas_src>
import math
import functools

import jax
import jax.numpy as jnp
from jax.experimental import pallas as pl
from jax.experimental.pallas import tpu as pltpu


# ----------------------------------------------------------------------------
# tiling helpers
# ----------------------------------------------------------------------------
def _pick_tile(dim, target, floor=128):
    """Largest tile <= target (halving) that divides dim; else the full dim."""
    t = target
    while t >= floor:
        if dim % t == 0:
            return t
        t //= 2
    return dim


def _pick_q_tile(S, G, budget_bytes=2 << 20):
    """Query tile: (G*tq, S) f32 score block ~ budget, G*tq >= 256 when possible."""
    if S % 128 != 0:
        return S                      # small / ragged S: single tile
    tq = 128
    for cand in (256, 512):
        if S % cand == 0 and G * cand * S * 4 <= budget_bytes:
            tq = cand
    # feed the 256-wide MXU (v6e / v7x) even for small groups
    while G * tq < 256 and tq * 2 <= S and S % (tq * 2) == 0:
        tq *= 2
    return min(tq, S)


# ----------------------------------------------------------------------------
# Tiled linear kernel: y = x @ w_t   (w_t already transposed / concatenated)
# ----------------------------------------------------------------------------
def _linear_kernel(x_ref, w_ref, o_ref, acc_ref):
    @pl.when(pl.program_id(2) == 0)
    def _():
        acc_ref[...] = jnp.zeros_like(acc_ref)

    acc_ref[...] += jnp.dot(x_ref[...], w_ref[...],
                            preferred_element_type=jnp.float32)

    @pl.when(pl.program_id(2) == pl.num_programs(2) - 1)
    def _():
        o_ref[...] = acc_ref[...].astype(o_ref.dtype)


def pallas_linear(x, w_t, *, out_dtype=None,
                  tm_target=256, tn_target=256, tk_target=512):
    """x: (M, K), w_t: (K, N) -> (M, N).  Operands are streamed as-is (pre-cast
    in the wrapper for bf16 mode); K axis accumulated in an f32 VMEM scratch."""
    M, K = x.shape
    K2, N = w_t.shape
    assert K == K2
    out_dtype = out_dtype if out_dtype is not None else x.dtype

    tm = _pick_tile(M, tm_target)
    tn = _pick_tile(N, tn_target)
    tk = _pick_tile(K, tk_target)
    grid = (M // tm, N // tn, K // tk)

    itx = jnp.dtype(x.dtype).itemsize
    itw = jnp.dtype(w_t.dtype).itemsize
    ito = jnp.dtype(out_dtype).itemsize
    # double-buffered tiles + f32 accumulator + modest headroom (no 32 MiB floor)
    need = 2 * (tm * tk * itx + tk * tn * itw + tm * tn * ito) + tm * tn * 4 + (4 << 20)
    vmem_limit = int(max(need, 16 << 20))

    cost = pl.CostEstimate(
        flops=int(2 * M * N * K),
        transcendentals=0,
        bytes_accessed=int(itx * M * K + itw * K * N + ito * M * N),
    )

    return pl.pallas_call(
        _linear_kernel,
        out_shape=jax.ShapeDtypeStruct((M, N), out_dtype),
        grid_spec=pltpu.PrefetchScalarGridSpec(
            num_scalar_prefetch=0,
            grid=grid,
            in_specs=[
                pl.BlockSpec((tm, tk), lambda i, j, kk: (i, kk)),
                pl.BlockSpec((tk, tn), lambda i, j, kk: (kk, j)),
            ],
            out_specs=pl.BlockSpec((tm, tn), lambda i, j, kk: (i, j)),
            scratch_shapes=[pltpu.VMEM((tm, tn), jnp.float32)],
        ),
        compiler_params=pltpu.CompilerParams(
            dimension_semantics=("parallel", "parallel", "arbitrary"),
            vmem_limit_bytes=vmem_limit,
        ),
        cost_estimate=cost,
    )(x, w_t)


# ----------------------------------------------------------------------------
# Grouped GQA attention kernel — reads q/k/v straight from the fused QKV buffer.
# grid = (B, nKV, S // tq);   q axis is "arbitrary" (K-RoPE scratch init at i==0)
# ----------------------------------------------------------------------------
def _attention_kernel(*refs, scale, has_mask, with_weights, compute_dtype):
    it = iter(refs)
    q_ref = next(it)                      # (1, tq, G*D)   q columns of this kv group
    k_ref = next(it)                      # (1, S,  D)     this kv head's K columns
    v_ref = next(it)                      # (1, S,  D)     this kv head's V columns
    mask_ref = next(it) if has_mask else None   # (1, 1, tq, S)
    cos_ref = next(it)                    # (S, D) f32
    sin_ref = next(it)                    # (S, D) f32  (rotate_half sign folded in)
    o_ref = next(it)                      # (1, tq, G*D)
    w_ref = next(it) if with_weights else None  # (1, G, tq, S)
    krot_ref = next(it)                   # VMEM scratch (S, D): RoPE'd K

    tq = q_ref.shape[1]
    S, D = k_ref.shape[1], k_ref.shape[2]
    G = q_ref.shape[2] // D
    half = D // 2
    i = pl.program_id(2)

    def rotate(x2d):
        # [x2 | x1] on a 2-D (rows, D) array; sign of rotate_half folded into sin.
        if D % 128 == 0:
            return pltpu.roll(x2d, shift=half, axis=1)          # non-negative axis!
        return jnp.concatenate([x2d[:, half:], x2d[:, :half]], axis=1)

    # --- K RoPE: once per (batch, kv-head); K block is resident across i ------
    @pl.when(i == 0)
    def _():
        kk = k_ref[0].astype(jnp.float32)                        # (S, D)
        krot_ref[...] = (kk * cos_ref[...] + rotate(kk) * sin_ref[...]
                         ).astype(krot_ref.dtype)

    # --- Q RoPE on this tile, 1/sqrt(D) folded into cos/sin -------------------
    r0 = pl.multiple_of(i * tq, tq)
    cos_q = cos_ref[pl.ds(r0, tq), :] * scale                    # (tq, D) f32
    sin_q = sin_ref[pl.ds(r0, tq), :] * scale
    rows = []
    for g in range(G):                                           # static, small
        qh = q_ref[0, :, g * D:(g + 1) * D].astype(jnp.float32)  # (tq, D)
        rows.append(qh * cos_q + rotate(qh) * sin_q)
    q2 = jnp.concatenate(rows, axis=0) if G > 1 else rows[0]     # (G*tq, D) head-major

    k = krot_ref[...]                                            # (S, D) compute dtype
    v = v_ref[0]                                                 # (S, D)

    # --- scores: all G query heads of the group in one MXU matmul -------------
    scores = jax.lax.dot_general(
        q2.astype(compute_dtype), k,
        dimension_numbers=(((1,), (1,)), ((), ())),
        preferred_element_type=jnp.float32,
    )                                                            # (G*tq, S) f32

    if has_mask:
        m = mask_ref[0, 0].astype(jnp.float32)                   # (tq, S)
        scores = (scores.reshape(G, tq, S) + m[None]).reshape(G * tq, S)

    # --- fp32 softmax ----------------------------------------------------------
    mx = jnp.max(scores, axis=-1, keepdims=True)
    e = jnp.exp(scores - mx)
    denom = jnp.sum(e, axis=-1, keepdims=True)
    if with_weights:
        probs = e / denom                       # exact: these weights are returned
        w_ref[0] = probs.reshape(G, tq, S).astype(w_ref.dtype)
    else:
        probs = e * pl.reciprocal(denom, approx=True)            # EUP slot

    o = jnp.dot(probs.astype(compute_dtype), v,
                preferred_element_type=jnp.float32)              # (G*tq, D)
    for g in range(G):                                           # static, small
        o_ref[0, :, g * D:(g + 1) * D] = o[g * tq:(g + 1) * tq, :].astype(o_ref.dtype)


def pallas_attention(qkv, cos, sin_signed, attention_mask, *,
                     num_heads, num_kv_heads, head_dim,
                     with_weights=True, q_tile=None):
    """qkv: (B, S, (nH + 2*nKV) * D) fused projection output (column order q|k|v),
    cos / sin_signed: (S, D) f32 RoPE tables (sign folded into sin),
    attention_mask: (B, 1, S, S) additive mask or None."""
    B, S, Nt = qkv.shape
    nH, nKV, D = num_heads, num_kv_heads, head_dim
    G = nH // nKV
    assert Nt == (nH + 2 * nKV) * D
    scale = 1.0 / math.sqrt(D)
    compute_dtype = qkv.dtype
    has_mask = attention_mask is not None

    tq = q_tile if q_tile is not None else _pick_q_tile(S, G)
    assert S % tq == 0
    n_q = S // tq

    kernel = functools.partial(
        _attention_kernel, scale=scale, has_mask=has_mask,
        with_weights=with_weights, compute_dtype=compute_dtype)

    # q/k/v are read from the SAME fused buffer via three BlockSpecs:
    #   q columns of kv-group g: block g       (block width G*D)
    #   K columns of kv-head  g: block nH + g  (block width D)
    #   V columns of kv-head  g: block nH + nKV + g
    in_specs = [
        pl.BlockSpec((1, tq, G * D), lambda b, g, i: (b, i, g)),
        pl.BlockSpec((1, S, D), lambda b, g, i: (b, 0, nH + g)),
        pl.BlockSpec((1, S, D), lambda b, g, i: (b, 0, nH + nKV + g)),
    ]
    inputs = [qkv, qkv, qkv]
    if has_mask:
        in_specs.append(pl.BlockSpec((1, 1, tq, S), lambda b, g, i: (b, 0, i, 0)))
        inputs.append(attention_mask)
    in_specs += [
        pl.BlockSpec((S, D), lambda b, g, i: (0, 0)),            # cos (grid-invariant)
        pl.BlockSpec((S, D), lambda b, g, i: (0, 0)),            # sin (sign folded)
    ]
    inputs += [cos, sin_signed]

    o_shape = jax.ShapeDtypeStruct((B, S, nH * D), compute_dtype)
    o_spec = pl.BlockSpec((1, tq, G * D), lambda b, g, i: (b, i, g))
    if with_weights:
        out_shape = (o_shape, jax.ShapeDtypeStruct((B, nH, S, S), compute_dtype))
        out_specs = (o_spec, pl.BlockSpec((1, G, tq, S), lambda b, g, i: (b, g, i, 0)))
    else:
        out_shape = o_shape
        out_specs = o_spec

    it = jnp.dtype(compute_dtype).itemsize
    need = (2 * (tq * G * D * it                  # q tile (double-buffered)
                 + 2 * S * D * it                 # K, V
                 + (tq * S * 4 if has_mask else 0)
                 + 2 * S * D * 4                  # cos, sin (f32)
                 + tq * G * D * it                # o tile
                 + (G * tq * S * it if with_weights else 0))
            + S * D * it                          # K-RoPE scratch
            + 4 * G * tq * S * 4                  # f32 softmax intermediates
            + (4 << 20))
    vmem_limit = int(max(need, 16 << 20))         # v7x-safe: only what is needed

    cost = pl.CostEstimate(
        flops=int(4 * B * nH * S * S * D),
        transcendentals=int(B * nH * S * S),
        bytes_accessed=int(it * (B * S * Nt + B * S * nH * D
                                 + (B * nH * S * S if with_weights else 0))
                           + (attention_mask.size * 4 if has_mask else 0)),
    )

    return pl.pallas_call(
        kernel,
        out_shape=out_shape,
        grid_spec=pltpu.PrefetchScalarGridSpec(
            num_scalar_prefetch=0,
            grid=(B, nKV, n_q),
            in_specs=in_specs,
            out_specs=out_specs,
            scratch_shapes=[pltpu.VMEM((S, D), compute_dtype)],   # RoPE'd K
        ),
        compiler_params=pltpu.CompilerParams(
            dimension_semantics=("parallel", "parallel", "arbitrary"),
            vmem_limit_bytes=vmem_limit,
        ),
        cost_estimate=cost,
    )(*inputs)


# ----------------------------------------------------------------------------
# RoPE table construction (tiny, plain JAX)
# ----------------------------------------------------------------------------
def rotary_cos_sin(position_ids, head_dim, base=10000.0):
    inv_freq = 1.0 / (base ** (jnp.arange(0, head_dim, 2, dtype=jnp.float32) / head_dim))
    freqs = position_ids.astype(jnp.float32)[:, None] * inv_freq[None, :]   # (S, D/2)
    emb = jnp.concatenate([freqs, freqs], axis=-1)                          # (S, D)
    return jnp.cos(emb), jnp.sin(emb)


def rotate_half(x):
    d = x.shape[-1]
    return jnp.concatenate([-x[..., d // 2:], x[..., : d // 2]], axis=-1)


# ----------------------------------------------------------------------------
# weight preparation (ONCE, not per forward call): transpose + fuse q|k|v
# ----------------------------------------------------------------------------
def prepare_params(params, compute_dtype=None):
    w_qkv_t = jnp.concatenate(
        [params["q_proj"].T, params["k_proj"].T, params["v_proj"].T], axis=1)
    w_o_t = params["o_proj"].T
    if compute_dtype is not None:
        w_qkv_t = w_qkv_t.astype(compute_dtype)
        w_o_t = w_o_t.astype(compute_dtype)
    return {"qkv_t": jnp.asarray(w_qkv_t), "o_t": jnp.asarray(w_o_t)}


# ----------------------------------------------------------------------------
# LiquidFusion forward (use_cache=False path)
# ----------------------------------------------------------------------------
def liquid_fusion_forward(hidden_states, prepared, cfg, attention_mask=None,
                          position_ids=None, compute_dtype=None,
                          output_attentions=True, q_tile=None):
    B, S, H = hidden_states.shape
    nH = cfg["num_attention_heads"]
    nKV = cfg["num_key_value_heads"]
    D = H // nH
    cdt = compute_dtype if compute_dtype is not None else hidden_states.dtype

    # fused q|k|v projection: x is streamed from HBM once; bf16 mode streams bf16
    x2d = hidden_states.reshape(B * S, H).astype(cdt)
    qkv = pallas_linear(x2d, prepared["qkv_t"], out_dtype=cdt)
    qkv = qkv.reshape(B, S, (nH + 2 * nKV) * D)            # pure reshape, no copy

    if position_ids is None:
        position_ids = jnp.arange(S, dtype=jnp.int32)
    cos, sin = rotary_cos_sin(position_ids, D)
    # fold rotate_half's sign into sin so the kernel only needs a half-rotation
    sign = jnp.concatenate([-jnp.ones((D // 2,), jnp.float32),
                            jnp.ones((D // 2,), jnp.float32)])
    sin_signed = sin * sign[None, :]

    res = pallas_attention(qkv, cos, sin_signed, attention_mask,
                           num_heads=nH, num_kv_heads=nKV, head_dim=D,
                           with_weights=output_attentions, q_tile=q_tile)
    if output_attentions:
        attn_out, attn_weights = res
    else:
        attn_out, attn_weights = res, None

    # attention output is already (B, S, nH*D): o_proj consumes it directly
    out = pallas_linear(attn_out.reshape(B * S, nH * D), prepared["o_t"],
                        out_dtype=hidden_states.dtype).reshape(B, S, H)

    past_key_value = None  # use_cache=False
    return out, attn_weights, past_key_value


# ----------------------------------------------------------------------------
# Pure-JAX reference for numerical check
# ----------------------------------------------------------------------------
def reference_forward(hidden_states, params, cfg, attention_mask=None):
    hp = jax.lax.Precision.HIGHEST
    B, S, H = hidden_states.shape
    nH = cfg["num_attention_heads"]
    nKV = cfg["num_key_value_heads"]
    groups = nH // nKV
    D = H // nH

    q = jnp.matmul(hidden_states, params["q_proj"].T, precision=hp)
    k = jnp.matmul(hidden_states, params["k_proj"].T, precision=hp)
    v = jnp.matmul(hidden_states, params["v_proj"].T, precision=hp)
    q = q.reshape(B, S, nH, D).transpose(0, 2, 1, 3)
    k = k.reshape(B, S, nKV, D).transpose(0, 2, 1, 3)
    v = v.reshape(B, S, nKV, D).transpose(0, 2, 1, 3)

    cos, sin = rotary_cos_sin(jnp.arange(S, dtype=jnp.int32), D)
    cos = cos[None, None]
    sin = sin[None, None]
    q = q * cos + rotate_half(q) * sin
    k = k * cos + rotate_half(k) * sin

    k = jnp.repeat(k, groups, axis=1)
    v = jnp.repeat(v, groups, axis=1)

    scores = jnp.einsum("bhqd,bhkd->bhqk", q, k, precision=hp) / math.sqrt(D)
    if attention_mask is not None:
        scores = scores + attention_mask
    w = jax.nn.softmax(scores.astype(jnp.float32), axis=-1).astype(q.dtype)
    o = jnp.einsum("bhqk,bhkd->bhqd", w, v, precision=hp)
    o = o.transpose(0, 2, 1, 3).reshape(B, S, H)
    return jnp.matmul(o, params["o_proj"].T, precision=hp), w


# ----------------------------------------------------------------------------
if __name__ == "__main__":
    cfg = dict(
        hidden_size=512,
        num_attention_heads=4,
        num_key_value_heads=2,
        max_position_embeddings=64,
    )
    B, S, H = 2, 16, cfg["hidden_size"]
    nH, nKV = cfg["num_attention_heads"], cfg["num_key_value_heads"]
    D = H // nH

    key = jax.random.PRNGKey(0)
    k0, k1, k2, k3, k4, k5, k6, k7 = jax.random.split(key, 8)
    wscale = 0.05
    params = {
        "q_proj": jax.random.normal(k0, (nH * D, H), dtype=jnp.float32) * wscale,
        "k_proj": jax.random.normal(k1, (nKV * D, H), dtype=jnp.float32) * wscale,
        "v_proj": jax.random.normal(k2, (nKV * D, H), dtype=jnp.float32) * wscale,
        "o_proj": jax.random.normal(k3, (H, nH * D), dtype=jnp.float32) * wscale,
    }
    hidden_states = jax.random.normal(k4, (B, S, H), dtype=jnp.float32)

    prepared = prepare_params(params)                          # once, f32
    prepared_bf16 = prepare_params(params, jnp.bfloat16)       # once, bf16 mode
    TOL = dict(atol=5e-3, rtol=5e-3)

    # --- standalone check of the tiled linear kernel (multi-step M/N/K grid) --
    xl = jax.random.normal(k5, (256, 1024), dtype=jnp.float32)
    wl = jax.random.normal(k6, (1024, 512), dtype=jnp.float32) * 0.02
    yl = jax.block_until_ready(pallas_linear(xl, wl))
    yl_ref = jnp.matmul(xl, wl, precision=jax.lax.Precision.HIGHEST)
    assert jnp.allclose(yl, yl_ref, **TOL), "tiled linear mismatch"

    # --- forward, no mask, with attention weights (torch always returns them) --
    out, attn_w, past_kv = liquid_fusion_forward(hidden_states, prepared, cfg)
    out = jax.block_until_ready(out)
    attn_w = jax.block_until_ready(attn_w)
    ref_out, ref_w = reference_forward(hidden_states, params, cfg)
    assert jnp.allclose(out, ref_out, **TOL), "output mismatch (no mask)"
    assert jnp.allclose(attn_w, ref_w, **TOL), "attn weights mismatch (no mask)"
    assert past_kv is None

    # --- forward with an additive (causal) mask -------------------------------
    causal = jnp.triu(jnp.full((S, S), -1e9, dtype=jnp.float32), k=1)
    mask = jnp.tile(causal[None, None], (B, 1, 1, 1))
    out_m, attn_w_m, _ = liquid_fusion_forward(hidden_states, prepared, cfg,
                                               attention_mask=mask)
    out_m = jax.block_until_ready(out_m)
    ref_out_m, ref_w_m = reference_forward(hidden_states, params, cfg,
                                           attention_mask=mask)
    assert jnp.allclose(out_m, ref_out_m, **TOL), "output mismatch (masked)"
    assert jnp.allclose(attn_w_m, ref_w_m, **TOL), "attn weights mismatch (masked)"

    # --- forward without the O(S^2) attn-weights HBM writeback ----------------
    out_nw, attn_w_nw, _ = liquid_fusion_forward(hidden_states, prepared, cfg,
                                                 output_attentions=False)
    out_nw = jax.block_until_ready(out_nw)
    assert attn_w_nw is None
    assert jnp.allclose(out_nw, ref_out, **TOL), "output mismatch (no weights out)"

    # --- multi-q-tile path (exercises the per-kv-head K-RoPE scratch reuse) ----
    B2, S2 = 1, 256
    hs2 = jax.random.normal(k7, (B2, S2, H), dtype=jnp.float32)
    causal2 = jnp.triu(jnp.full((S2, S2), -1e9, dtype=jnp.float32), k=1)
    mask2 = jnp.tile(causal2[None, None], (B2, 1, 1, 1))
    out2, attn_w2, _ = liquid_fusion_forward(hs2, prepared, cfg,
                                             attention_mask=mask2, q_tile=128)
    out2 = jax.block_until_ready(out2)
    ref_out2, ref_w2 = reference_forward(hs2, params, cfg, attention_mask=mask2)
    assert jnp.allclose(out2, ref_out2, **TOL), "output mismatch (tiled q)"
    assert jnp.allclose(attn_w2, ref_w2, **TOL), "attn weights mismatch (tiled q)"

    # --- bf16 MXU path (bf16 streamed from HBM, f32 accumulation) --------------
    out_bf, _, _ = liquid_fusion_forward(hidden_states, prepared_bf16, cfg,
                                         compute_dtype=jnp.bfloat16)
    out_bf = jax.block_until_ready(out_bf)
    assert jnp.allclose(out_bf, ref_out, atol=1e-1, rtol=1e-1), "bf16 output mismatch"

    print("KERNEL_OK")
</pallas_src>

<mosaic_0001>
module attributes {stable_mosaic.version = 11 : i64} {
  func.func @_linear_kernel(%arg0: i32, %arg1: i32, %arg2: i32, %arg3: memref<256x512xf32, #tpu.memory_space<vmem>>, %arg4: memref<512x256xf32, #tpu.memory_space<vmem>>, %arg5: memref<256x256xf32, #tpu.memory_space<vmem>>, %arg6: memref<256x256xf32, #tpu.memory_space<vmem>>) attributes {dimension_semantics = [#tpu.dimension_semantics<parallel>, #tpu.dimension_semantics<parallel>, #tpu.dimension_semantics<arbitrary>], iteration_bounds = array<i64: 1, 2, 2>, scalar_prefetch = 0 : i64, scratch_operands = 1 : i64, tpu.core_type = #tpu.core_type<tc>, window_params = [{transform_indices = @transform_0, window_bounds = array<i64: 256, 512>}, {transform_indices = @transform_1, window_bounds = array<i64: 512, 256>}, {transform_indices = @transform_2, window_bounds = array<i64: 256, 256>}]} {
    %c0_i32 = arith.constant 0 : i32
    %0 = arith.cmpi eq, %arg2, %c0_i32 : i32
    %1 = arith.extui %0 : i1 to i32
    %c0_i32_0 = arith.constant 0 : i32
    %2 = arith.cmpi ne, %1, %c0_i32_0 : i32
    scf.if %2 {
      %cst_9 = arith.constant 0.000000e+00 : f32
      %12 = vector.broadcast %cst_9 : f32 to vector<256x256xf32>
      %c0_10 = arith.constant 0 : index
      %c0_11 = arith.constant 0 : index
      %13 = vector.load %arg6[%c0_10, %c0_11] : memref<256x256xf32, #tpu.memory_space<vmem>>, vector<256x256xf32>
      tpu.vector_store %arg6[%c0_10, %c0_11], %12 {strides = array<i32>} : memref<256x256xf32, #tpu.memory_space<vmem>>, vector<256x256xf32>,
    } else {
    }
    %c0 = arith.constant 0 : index
    %c0_1 = arith.constant 0 : index
    %3 = vector.load %arg6[%c0, %c0_1] : memref<256x256xf32, #tpu.memory_space<vmem>>, vector<256x256xf32>
    %c0_2 = arith.constant 0 : index
    %c0_3 = arith.constant 0 : index
    %4 = vector.load %arg3[%c0_2, %c0_3] : memref<256x512xf32, #tpu.memory_space<vmem>>, vector<256x512xf32>
    %c0_4 = arith.constant 0 : index
    %c0_5 = arith.constant 0 : index
    %5 = vector.load %arg4[%c0_4, %c0_5] : memref<512x256xf32, #tpu.memory_space<vmem>>, vector<512x256xf32>
    %cst = arith.constant dense<0.000000e+00> : vector<256x256xf32>
    %6 = tpu.matmul %4, %5, %cst {dimension_numbers = #tpu.dot_dimension_numbers<[1], [0], [0], [1], [0, 0, 1, 1], [], []>} : vector<256x512xf32>, vector<512x256xf32>, vector<256x256xf32> -> vector<256x256xf32>
    %7 = arith.addf %3, %6 : vector<256x256xf32>
    %c0_6 = arith.constant 0 : index
    %c0_7 = arith.constant 0 : index
    %8 = vector.load %arg6[%c0_6, %c0_7] : memref<256x256xf32, #tpu.memory_space<vmem>>, vector<256x256xf32>
    tpu.vector_store %arg6[%c0_6, %c0_7], %7 {strides = array<i32>} : memref<256x256xf32, #tpu.memory_space<vmem>>, vector<256x256xf32>,
    %c1_i32 = arith.constant 1 : i32
    %9 = arith.cmpi eq, %arg2, %c1_i32 : i32
    %10 = arith.extui %9 : i1 to i32
    %c0_i32_8 = arith.constant 0 : i32
    %11 = arith.cmpi ne, %10, %c0_i32_8 : i32
    scf.if %11 {
      %c0_9 = arith.constant 0 : index
      %c0_10 = arith.constant 0 : index
      %12 = vector.load %arg6[%c0_9, %c0_10] : memref<256x256xf32, #tpu.memory_space<vmem>>, vector<256x256xf32>
      %c0_11 = arith.constant 0 : index
      %c0_12 = arith.constant 0 : index
      %13 = vector.load %arg5[%c0_11, %c0_12] : memref<256x256xf32, #tpu.memory_space<vmem>>, vector<256x256xf32>
      tpu.vector_store %arg5[%c0_11, %c0_12], %12 {strides = array<i32>} : memref<256x256xf32, #tpu.memory_space<vmem>>, vector<256x256xf32>,
    } else {
    }
    return
  }
  func.func @transform_0(%arg0: i32, %arg1: i32, %arg2: i32) -> (i32, i32) {
    %c0_i32 = arith.constant 0 : i32
    return %arg0, %arg2 : i32, i32
  }
  func.func @transform_1(%arg0: i32, %arg1: i32, %arg2: i32) -> (i32, i32) {
    %c0_i32 = arith.constant 0 : i32
    return %arg2, %arg1 : i32, i32
  }
  func.func @transform_2(%arg0: i32, %arg1: i32, %arg2: i32) -> (i32, i32) {
    %c0_i32 = arith.constant 0 : i32
    return %arg0, %arg1 : i32, i32
  }
}

</mosaic_0001>

<llo_original>
// kernel: tpu_custom_call.1
$region0: #{tpu_custom_call.1}
  #allocation0 [shape = 'u32[]', space=smem, size = 0x4, offset = 0x4, fixed_abs, tag = 'smem constant byte address 0x4 - core index']
  #allocation1 [shape = 'u32[72,128]{1,0:T(1,128)}', space=vmem, size = 0x9000, scoped, tag = 'internal scratch']
  #allocation2 [shape = 'f32[256,256]{1,0:T(8,128)}', space=vmem, size = 0x40000, scoped, tag = 'scratch operand']
  %s0 = inlined_call_operand.hbm [shape: f32[256,1024], index: 0, kind: input, shape index: {}]
  %s1 = inlined_call_operand.hbm [shape: f32[1024,512], index: 1, kind: input, shape index: {}]
  %s2 = inlined_call_operand.hbm [shape: f32[256,512], index: 2, kind: output, shape index: {}]
  %s3 = sld [smem:[#allocation0]]
  $region57: #{tpu_custom_call.1} parent=0
    _
  %s5 = ssub.s32 1, %s3
  %s6 = scalar_select 0, %s5, %s3
  $region1: #{tpu_custom_call.1} parent=0
    #allocation3 [shape = 'u8[1048576]{0}', space=vmem, size = 0x100000, scoped, tag = 'input window, operand 0']
    #allocation4 [shape = 's32[2]{0}', space=sflag, size = 0x8, scoped, tag = 'scoped memory for tpu_custom_call.1']
    #allocation5 [shape = 's32[2]{0}', space=sflag, size = 0x8, scoped, tag = 'scoped memory for tpu_custom_call.1']
    #allocation6 [shape = 'u8[1048576]{0}', space=vmem, size = 0x100000, scoped, tag = 'input window, operand 1']
    #allocation7 [shape = 's32[2]{0}', space=sflag, size = 0x8, scoped, tag = 'scoped memory for tpu_custom_call.1']
    #allocation8 [shape = 'u8[524288]{0}', space=vmem, size = 0x80000, scoped, tag = 'output window, operand 0']
    %7 = vsyncpa [#allocation4], 0
    %s8 = scalar_lea.sflag [#allocation4], 1
    %9 = vsyncpa %s8, 0
    %10 = vsyncpa [#allocation7], 0
    %s11 = scalar_lea.sflag [#allocation7], 1
    %12 = vsyncpa %s11, 0
    %13 = vsyncpa [#allocation5], 0
    %s14 = scalar_lea.sflag [#allocation5], 1
    %15 = vsyncpa %s14, 0
    loop: start=0, step=1, limit=6
    $region2: #{tpu_custom_call.1} parent=1 // loop_pre_header
      _
    $region3: #{tpu_custom_call.1} parent=1 // loop_header
      %s17 = sphi 0, %s21
      %p18 = scmp.ge.s32.totalorder %s17, 6
      %s24 = sphi 0, %s43
      %s25 = sphi 0, %s39
      %s26 = sphi 0, %s35
      %s27 = sphi 0, %s24
      %s28 = sphi 0, %s25
      %s29 = sphi 0, %s26
      %s30 = sphi 0, %s27
      %s31 = sphi 0, %s28
      %s32 = sphi 0, %s29
      %s48 = sphi 0, %s50
      %s51 = sphi 0, %s48
      %s52 = sphi 0, %s51
      %s68 = sphi 0, %s52
      %s76 = sphi 0, %s78
      %s79 = sphi 0, %s76
      %s80 = sphi 0, %s79
      %s96 = sphi 0, %s80
      %s104 = sphi 0, %s106
      %s107 = sphi 0, %s104
      %s108 = sphi 0, %s107
      %s124 = sphi 0, %s108
    $region4: #{tpu_custom_call.1} parent=1 // loop_header_branch
      %20 = sbr.rel (%p18) target = $region8
    $region5: #{tpu_custom_call.1} parent=1 // loop_body
      %s22 = ssub.s32 %s17, 1
      %s23 = ssub.s32 %s17, 2
      %s33 = sadd.s32 1, %s26
      %p34 = scmp.ge.s32.totalorder %s33, 2
      %s35 = scalar_select %p34, 0, %s33
      %s36 = sadd.s32 1, %s25
      %s37 = scalar_select %p34, %s36, %s25
      %p38 = scmp.ge.s32.totalorder %s37, 2
      %s39 = scalar_select %p38, 0, %s37
      %s40 = sadd.s32 1, %s24
      %s41 = scalar_select %p38, %s40, %s24
      %p42 = scmp.ge.s32.totalorder %s41, 1
      %s43 = scalar_select %p42, 0, %s41
      %s44 = ssub.s32 %s24, %s43
      %s45 = ssub.s32 %s26, %s35
      %s46 = sor.u32 %s44, %s45
      %p47 = scmp.eq.s32.totalorder %s46, 0
      %s49 = sadd.s32 %s48, 1
      %s50 = scalar_select %p47, %s48, %s49
      %p53 = pneg %p47
      %p54 = scmp.eq.s32.totalorder %s17, 3
      %p55 = por %p53, %p54
      %p56 = scmp.ne.s32.totalorder %s48, %s51
      %p57 = scmp.eq.s32.totalorder %s17, 0
      %p58 = por %p56, %p57
      %p59 = scmp.ne.s32.totalorder %s48, %s51
      %p60 = scmp.eq.s32.totalorder %s22, 3
      %p61 = por %p59, %p60
      %p62 = scmp.ne.s32.totalorder %s51, %s52
      %p63 = scmp.eq.s32.totalorder %s22, 0
      %p64 = por %p62, %p63
      %p65 = scmp.ne.s32.totalorder %s51, %s52
      %p66 = scmp.eq.s32.totalorder %s23, 3
      %p67 = por %p65, %p66
      %p69 = scmp.ne.s32.totalorder %s52, %s68
      %p70 = scmp.eq.s32.totalorder %s23, 0
      %p71 = por %p69, %p70
      %s72 = ssub.s32 %s26, %s35
      %s73 = ssub.s32 %s25, %s39
      %s74 = sor.u32 %s72, %s73
      %p75 = scmp.eq.s32.totalorder %s74, 0
      %s77 = sadd.s32 %s76, 1
      %s78 = scalar_select %p75, %s76, %s77
      %p81 = pneg %p75
      %p82 = scmp.eq.s32.totalorder %s17, 3
      %p83 = por %p81, %p82
      %p84 = scmp.ne.s32.totalorder %s76, %s79
      %p85 = scmp.eq.s32.totalorder %s17, 0
      %p86 = por %p84, %p85
      %p87 = scmp.ne.s32.totalorder %s76, %s79
      %p88 = scmp.eq.s32.totalorder %s22, 3
      %p89 = por %p87, %p88
      %p90 = scmp.ne.s32.totalorder %s79, %s80
      %p91 = scmp.eq.s32.totalorder %s22, 0
      %p92 = por %p90, %p91
      %p93 = scmp.ne.s32.totalorder %s79, %s80
      %p94 = scmp.eq.s32.totalorder %s23, 3
      %p95 = por %p93, %p94
      %p97 = scmp.ne.s32.totalorder %s80, %s96
      %p98 = scmp.eq.s32.totalorder %s23, 0
      %p99 = por %p97, %p98
      %s100 = ssub.s32 %s24, %s43
      %s101 = ssub.s32 %s25, %s39
      %s102 = sor.u32 %s100, %s101
      %p103 = scmp.eq.s32.totalorder %s102, 0
      %s105 = sadd.s32 %s104, 1
      %s106 = scalar_select %p103, %s104, %s105
      %p109 = pneg %p103
      %p110 = scmp.eq.s32.totalorder %s17, 3
      %p111 = por %p109, %p110
      %p112 = scmp.ne.s32.totalorder %s104, %s107
      %p113 = scmp.eq.s32.totalorder %s17, 0
      %p114 = por %p112, %p113
      %p115 = scmp.ne.s32.totalorder %s104, %s107
      %p116 = scmp.eq.s32.totalorder %s22, 3
      %p117 = por %p115, %p116
      %p118 = scmp.ne.s32.totalorder %s107, %s108
      %p119 = scmp.eq.s32.totalorder %s22, 0
      %p120 = por %p118, %p119
      %p121 = scmp.ne.s32.totalorder %s107, %s108
      %p122 = scmp.eq.s32.totalorder %s23, 3
      %p123 = por %p121, %p122
      %p125 = scmp.ne.s32.totalorder %s108, %s124
      %p126 = scmp.eq.s32.totalorder %s23, 0
      %p127 = por %p125, %p126
      %p128 = scmp.le.s32.totalorder 1, %s17
      %p129 = scmp.lt.s32.totalorder %s17, 5
      %p130 = pnand %p128, %p129
      %p131 = pneg %p130
      // Predicated region
      $region9: #{tpu_custom_call.1} parent=5 // pred_check
        _
      $region10: #{tpu_custom_call.1} parent=5 // pred_check_branch
        %133 = sbr.rel (%p130) target = $region12
      $region11: #{tpu_custom_call.1} parent=5 // pred_region
        %s134 = ssub.s32 %s17, 1
      $region12: #{tpu_custom_call.1} parent=5 // pred_fallthru
        _
      %p135 = scmp.lt.s32.totalorder %s17, 4
      // Predicated region
      $region13: #{tpu_custom_call.1} parent=5 // pred_check
        %p136 = pneg %p135
      $region14: #{tpu_custom_call.1} parent=5 // pred_check_branch
        %138 = sbr.rel (%p136) target = $region16
      $region15: #{tpu_custom_call.1} parent=5 // pred_region
        // Predicated region
        $region17: #{tpu_custom_call.1} parent=15 // pred_check
          %p139 = pneg %p58
        $region18: #{tpu_custom_call.1} parent=15 // pred_check_branch
          %141 = sbr.rel (%p139) target = $region20
        $region19: #{tpu_custom_call.1} parent=15 // pred_region
          %s142 = sand.u32 %s48, 1
          %s143 = scalar_lea.sflag [#allocation4], %s142
          %s144 = sand.u32 %s48, 1
          %s145 = smul.addr %s144, 1024
          %s146 = scalar_lea.vmem [#allocation3], %s145
          %s147 = smul.u32 32, %s24
          %s148 = smul.u32 4, %s26
          %150 = vsyncadd %s143, 0
          %s151 = smul.addr %s147, 8
          %s152 = sadd.s32 %s148, %s151
          %s153 = smul.addr %s152, 8
          %s154 = scalar_lea.hbm %s0, %s153
          %s155 = sshll.u32 %s154, 4
          %s156 = int_to_ptr.hbm [resolvable:$true] %s155
          %s157 = sshll.u32 %s146, 4
          %s158 = int_to_ptr.vmem [resolvable:$true] %s157
          %163 = dma.hbm_to_vmem [thread:$0]  %s156, 16384, %s158, %s143, 1024, 512, 32
        $region20: #{tpu_custom_call.1} parent=15 // pred_fallthru
          _
        // Predicated region
        $region21: #{tpu_custom_call.1} parent=15 // pred_check
          %p164 = pneg %p86
        $region22: #{tpu_custom_call.1} parent=15 // pred_check_branch
          %166 = sbr.rel (%p164) target = $region24
        $region23: #{tpu_custom_call.1} parent=15 // pred_region
          %s167 = sand.u32 %s76, 1
          %s168 = scalar_lea.sflag [#allocation7], %s167
          %s169 = sand.u32 %s76, 1
          %s170 = smul.addr %s169, 1024
          %s171 = scalar_lea.vmem [#allocation6], %s170
          %s172 = smul.u32 64, %s26
          %s173 = smul.u32 2, %s25
          %175 = vsyncadd %s168, 0
          %s176 = smul.addr %s172, 4
          %s177 = sadd.s32 %s173, %s176
          %s178 = smul.addr %s177, 8
          %s179 = scalar_lea.hbm %s1, %s178
          %s180 = sshll.u32 %s179, 4
          %s181 = int_to_ptr.hbm [resolvable:$true] %s180
          %s182 = sshll.u32 %s171, 4
          %s183 = int_to_ptr.vmem [resolvable:$true] %s182
          %188 = dma.hbm_to_vmem [thread:$0]  %s181, 16384, %s183, %s168, 512, 256, 16
        $region24: #{tpu_custom_call.1} parent=15 // pred_fallthru
          _
      $region16: #{tpu_custom_call.1} parent=5 // pred_fallthru
        _
      %p189 = scmp.le.s32.totalorder 1, %s17
      %p190 = scmp.lt.s32.totalorder %s17, 5
      %p191 = pnand %p189, %p190
      %p192 = pneg %p191
      // Predicated region
      $region25: #{tpu_custom_call.1} parent=5 // pred_check
        _
      $region26: #{tpu_custom_call.1} parent=5 // pred_check_branch
        %194 = sbr.rel (%p191) target = $region28
      $region27: #{tpu_custom_call.1} parent=5 // pred_region
        %s195 = ssub.s32 %s17, 1
        %s196 = sand.u32 %s51, 1
        %s197 = scalar_lea.sflag [#allocation4], %s196
        %s198 = sand.u32 %s51, 1
        %s199 = smul.addr %s198, 1024
        %s200 = scalar_lea.vmem [#allocation3], %s199
        // Predicated region
        $region29: #{tpu_custom_call.1} parent=27 // pred_check
          %p201 = pneg %p64
        $region30: #{tpu_custom_call.1} parent=27 // pred_check_branch
          %203 = sbr.rel (%p201) target = $region32
        $region31: #{tpu_custom_call.1} parent=27 // pred_region
          %205 = dma.done %s197, 16384
        $region32: #{tpu_custom_call.1} parent=27 // pred_fallthru
          _
        %s206 = sand.u32 %s79, 1
        %s207 = scalar_lea.sflag [#allocation7], %s206
        %s208 = sand.u32 %s79, 1
        %s209 = smul.addr %s208, 1024
        %s210 = scalar_lea.vmem [#allocation6], %s209
        // Predicated region
        $region33: #{tpu_custom_call.1} parent=27 // pred_check
          %p211 = pneg %p92
        $region34: #{tpu_custom_call.1} parent=27 // pred_check_branch
          %213 = sbr.rel (%p211) target = $region36
        $region35: #{tpu_custom_call.1} parent=27 // pred_region
          %215 = dma.done %s207, 16384
        $region36: #{tpu_custom_call.1} parent=27 // pred_fallthru
          _
        %s216 = sand.u32 %s51, 1
        %s217 = scalar_lea.sflag [#allocation4], %s216
        %s218 = sand.u32 %s51, 1
        %s219 = smul.addr %s218, 1024
        %s220 = scalar_lea.vmem [#allocation3], %s219
        %p221 = pneg %p64
        %p222 = pneg %p61
        %s223 = sand.u32 %s79, 1
        %s224 = scalar_lea.sflag [#allocation7], %s223
        %s225 = sand.u32 %s79, 1
        %s226 = smul.addr %s225, 1024
        %s227 = scalar_lea.vmem [#allocation6], %s226
        %p228 = pneg %p92
        %p229 = pneg %p89
        %p230 = pneg %p120
        %p231 = pneg %p117
        %s232 = sand.u32 %s107, 1
        %s233 = scalar_lea.sflag [#allocation5], %s232
        %s234 = sand.u32 %s107, 1
        %s235 = smul.addr %s234, 512
        %s236 = scalar_lea.vmem [#allocation8], %s235
        %s237 = smul.u32 32, %s27
        %s238 = smul.u32 4, %s29
        %s239 = smul.u32 64, %s29
        %s240 = smul.u32 2, %s28
        %s241 = smul.u32 32, %s27
        %s242 = smul.u32 2, %s28
        %p243 = scmp.eq.s32.totalorder %s29, 0
        // Predicated region
        $region37: #{tpu_custom_call.1} parent=27 // pred_check
          %p244 = pneg %p243
        $region38: #{tpu_custom_call.1} parent=27 // pred_check_branch
          %246 = sbr.rel (%p244) target = $region40
        $region39: #{tpu_custom_call.1} parent=27 // pred_region
          %247 = vst [vmem:[#allocation2] sm:$0xff] 0.0
          %248 = vst [vmem:[#allocation2 + $0x8] sm:$0xff] 0.0
          %249 = vst [vmem:[#allocation2 + $0x10] sm:$0xff] 0.0
          %250 = vst [vmem:[#allocation2 + $0x18] sm:$0xff] 0.0
          %251 = vst [vmem:[#allocation2 + $0x20] sm:$0xff] 0.0
          %252 = vst [vmem:[#allocation2 + $0x28] sm:$0xff] 0.0
          %253 = vst [vmem:[#allocation2 + $0x30] sm:$0xff] 0.0
          %254 = vst [vmem:[#allocation2 + $0x38] sm:$0xff] 0.0
          %255 = vst [vmem:[#allocation2 + $0x40] sm:$0xff] 0.0
          %256 = vst [vmem:[#allocation2 + $0x48] sm:$0xff] 0.0
          %257 = vst [vmem:[#allocation2 + $0x50] sm:$0xff] 0.0
          %258 = vst [vmem:[#allocation2 + $0x58] sm:$0xff] 0.0
          %259 = vst [vmem:[#allocation2 + $0x60] sm:$0xff] 0.0
          %260 = vst [vmem:[#allocation2 + $0x68] sm:$0xff] 0.0
          %261 = vst [vmem:[#allocation2 + $0x70] sm:$0xff] 0.0
          %262 = vst [vmem:[#allocation2 + $0x78] sm:$0xff] 0.0
          %263 = vst [vmem:[#allocation2 + $0x80] sm:$0xff] 0.0
          %264 = vst [vmem:[#allocation2 + $0x88] sm:$0xff] 0.0
          %265 = vst [vmem:[#allocation2 + $0x90] sm:$0xff] 0.0
          %266 = vst [vmem:[#allocation2 + $0x98] sm:$0xff] 0.0
          %267 = vst [vmem:[#allocation2 + $0xa0] sm:$0xff] 0.0
          %268 = vst [vmem:[#allocation2 + $0xa8] sm:$0xff] 0.0
          %269 = vst [vmem:[#allocation2 + $0xb0] sm:$0xff] 0.0
          %270 = vst [vmem:[#allocation2 + $0xb8] sm:$0xff] 0.0
          %271 = vst [vmem:[#allocation2 + $0xc0] sm:$0xff] 0.0
          %272 = vst [vmem:[#allocation2 + $0xc8] sm:$0xff] 0.0
          %273 = vst [vmem:[#allocation2 + $0xd0] sm:$0xff] 0.0
          %274 = vst [vmem:[#allocation2 + $0xd8] sm:$0xff] 0.0
          %275 = vst [vmem:[#allocation2 + $0xe0] sm:$0xff] 0.0
          %276 = vst [vmem:[#allocation2 + $0xe8] sm:$0xff] 0.0
          %277 = vst [vmem:[#allocation2 + $0xf0] sm:$0xff] 0.0
          %278 = vst [vmem:[#allocation2 + $0xf8] sm:$0xff] 0.0
          %279 = vst [vmem:[#allocation2 + $0x100] sm:$0xff] 0.0
          %280 = vst [vmem:[#allocation2 + $0x108] sm:$0xff] 0.0
          %281 = vst [vmem:[#allocation2 + $0x110] sm:$0xff] 0.0
          %282 = vst [vmem:[#allocation2 + $0x118] sm:$0xff] 0.0
          %283 = vst [vmem:[#allocation2 + $0x120] sm:$0xff] 0.0
          %284 = vst [vmem:[#allocation2 + $0x128] sm:$0xff] 0.0
          %285 = vst [vmem:[#allocation2 + $0x130] sm:$0xff] 0.0
          %286 = vst [vmem:[#allocation2 + $0x138] sm:$0xff] 0.0
          %287 = vst [vmem:[#allocation2 + $0x140] sm:$0xff] 0.0
          %288 = vst [vmem:[#allocation2 + $0x148] sm:$0xff] 0.0
          %289 = vst [vmem:[#allocation2 + $0x150] sm:$0xff] 0.0
          %290 = vst [vmem:[#allocation2 + $0x158] sm:$0xff] 0.0
          %291 = vst [vmem:[#allocation2 + $0x160] sm:$0xff] 0.0
          %292 = vst [vmem:[#allocation2 + $0x168] sm:$0xff] 0.0
          %293 = vst [vmem:[#allocation2 + $0x170] sm:$0xff] 0.0
          %294 = vst [vmem:[#allocation2 + $0x178] sm:$0xff] 0.0
          %295 = vst [vmem:[#allocation2 + $0x180] sm:$0xff] 0.0
          %296 = vst [vmem:[#allocation2 + $0x188] sm:$0xff] 0.0
          %297 = vst [vmem:[#allocation2 + $0x190] sm:$0xff] 0.0
          %298 = vst [vmem:[#allocation2 + $0x198] sm:$0xff] 0.0
          %299 = vst [vmem:[#allocation2 + $0x1a0] sm:$0xff] 0.0
          %300 = vst [vmem:[#allocation2 + $0x1a8] sm:$0xff] 0.0
          %301 = vst [vmem:[#allocation2 + $0x1b0] sm:$0xff] 0.0
          %302 = vst [vmem:[#allocation2 + $0x1b8] sm:$0xff] 0.0
          %303 = vst [vmem:[#allocation2 + $0x1c0] sm:$0xff] 0.0
          %304 = vst [vmem:[#allocation2 + $0x1c8] sm:$0xff] 0.0
          %305 = vst [vmem:[#allocation2 + $0x1d0] sm:$0xff] 0.0
          %306 = vst [vmem:[#allocation2 + $0x1d8] sm:$0xff] 0.0
          %307 = vst [vmem:[#allocation2 + $0x1e0] sm:$0xff] 0.0
          %308 = vst [vmem:[#allocation2 + $0x1e8] sm:$0xff] 0.0
          %309 = vst [vmem:[#allocation2 + $0x1f0] sm:$0xff] 0.0
          %310 = vst [vmem:[#allocation2 + $0x1f8] sm:$0xff] 0.0
        $region40: #{tpu_custom_call.1} parent=27 // pred_fallthru
          _
        %v311 = vld [vmem:[#allocation2] sm:$0xff]
        %v312 = vld [vmem:[#allocation2 + $0x8] sm:$0xff]
        %v313 = vld [vmem:[#allocation2 + $0x10] sm:$0xff]
        %v314 = vld [vmem:[#allocation2 + $0x18] sm:$0xff]
        %v315 = vld [vmem:[#allocation2 + $0x20] sm:$0xff]
        %v316 = vld [vmem:[#allocation2 + $0x28] sm:$0xff]
        %v317 = vld [vmem:[#allocation2 + $0x30] sm:$0xff]
        %v318 = vld [vmem:[#allocation2 + $0x38] sm:$0xff]
        %v319 = vld [vmem:[#allocation2 + $0x40] sm:$0xff]
        %v320 = vld [vmem:[#allocation2 + $0x48] sm:$0xff]
        %v321 = vld [vmem:[#allocation2 + $0x50] sm:$0xff]
        %v322 = vld [vmem:[#allocation2 + $0x58] sm:$0xff]
        %v323 = vld [vmem:[#allocation2 + $0x60] sm:$0xff]
        %v324 = vld [vmem:[#allocation2 + $0x68] sm:$0xff]
        %v325 = vld [vmem:[#allocation2 + $0x70] sm:$0xff]
        %v326 = vld [vmem:[#allocation2 + $0x78] sm:$0xff]
        %v327 = vld [vmem:[#allocation2 + $0x80] sm:$0xff]
        %v328 = vld [vmem:[#allocation2 + $0x88] sm:$0xff]
        %v329 = vld [vmem:[#allocation2 + $0x90] sm:$0xff]
        %v330 = vld [vmem:[#allocation2 + $0x98] sm:$0xff]
        %v331 = vld [vmem:[#allocation2 + $0xa0] sm:$0xff]
        %v332 = vld [vmem:[#allocation2 + $0xa8] sm:$0xff]
        %v333 = vld [vmem:[#allocation2 + $0xb0] sm:$0xff]
        %v334 = vld [vmem:[#allocation2 + $0xb8] sm:$0xff]
        %v335 = vld [vmem:[#allocation2 + $0xc0] sm:$0xff]
        %v336 = vld [vmem:[#allocation2 + $0xc8] sm:$0xff]
        %v337 = vld [vmem:[#allocation2 + $0xd0] sm:$0xff]
        %v338 = vld [vmem:[#allocation2 + $0xd8] sm:$0xff]
        %v339 = vld [vmem:[#allocation2 + $0xe0] sm:$0xff]
        %v340 = vld [vmem:[#allocation2 + $0xe8] sm:$0xff]
        %v341 = vld [vmem:[#allocation2 + $0xf0] sm:$0xff]
        %v342 = vld [vmem:[#allocation2 + $0xf8] sm:$0xff]
        %v343 = vld [vmem:[#allocation2 + $0x100] sm:$0xff]
        %v344 = vld [vmem:[#allocation2 + $0x108] sm:$0xff]
        %v345 = vld [vmem:[#allocation2 + $0x110] sm:$0xff]
        %v346 = vld [vmem:[#allocation2 + $0x118] sm:$0xff]
        %v347 = vld [vmem:[#allocation2 + $0x120] sm:$0xff]
        %v348 = vld [vmem:[#allocation2 + $0x128] sm:$0xff]
        %v349 = vld [vmem:[#allocation2 + $0x130] sm:$0xff]
        %v350 = vld [vmem:[#allocation2 + $0x138] sm:$0xff]
        %v351 = vld [vmem:[#allocation2 + $0x140] sm:$0xff]
        %v352 = vld [vmem:[#allocation2 + $0x148] sm:$0xff]
        %v353 = vld [vmem:[#allocation2 + $0x150] sm:$0xff]
        %v354 = vld [vmem:[#allocation2 + $0x158] sm:$0xff]
        %v355 = vld [vmem:[#allocation2 + $0x160] sm:$0xff]
        %v356 = vld [vmem:[#allocation2 + $0x168] sm:$0xff]
        %v357 = vld [vmem:[#allocation2 + $0x170] sm:$0xff]
        %v358 = vld [vmem:[#allocation2 + $0x178] sm:$0xff]
        %v359 = vld [vmem:[#allocation2 + $0x180] sm:$0xff]
        %v360 = vld [vmem:[#allocation2 + $0x188] sm:$0xff]
        %v361 = vld [vmem:[#allocation2 + $0x190] sm:$0xff]
        %v362 = vld [vmem:[#allocation2 + $0x198] sm:$0xff]
        %v363 = vld [vmem:[#allocation2 + $0x1a0] sm:$0xff]
        %v364 = vld [vmem:[#allocation2 + $0x1a8] sm:$0xff]
        %v365 = vld [vmem:[#allocation2 + $0x1b0] sm:$0xff]
        %v366 = vld [vmem:[#allocation2 + $0x1b8] sm:$0xff]
        %v367 = vld [vmem:[#allocation2 + $0x1c0] sm:$0xff]
        %v368 = vld [vmem:[#allocation2 + $0x1c8] sm:$0xff]
        %v369 = vld [vmem:[#allocation2 + $0x1d0] sm:$0xff]
        %v370 = vld [vmem:[#allocation2 + $0x1d8] sm:$0xff]
        %v371 = vld [vmem:[#allocation2 + $0x1e0] sm:$0xff]
        %v372 = vld [vmem:[#allocation2 + $0x1e8] sm:$0xff]
        %v373 = vld [vmem:[#allocation2 + $0x1f0] sm:$0xff]
        %v374 = vld [vmem:[#allocation2 + $0x1f8] sm:$0xff]
        %v375 = vld [vmem:[%s200] sm:$0xff]
        %v376 = vld [vmem:[%s200 + $0x8] sm:$0xff]
        %v377 = vld [vmem:[%s200 + $0x10] sm:$0xff]
        %v378 = vld [vmem:[%s200 + $0x18] sm:$0xff]
        %v379 = vld [vmem:[%s200 + $0x20] sm:$0xff]
        %v380 = vld [vmem:[%s200 + $0x28] sm:$0xff]
        %v381 = vld [vmem:[%s200 + $0x30] sm:$0xff]
        %v382 = vld [vmem:[%s200 + $0x38] sm:$0xff]
        %v383 = vld [vmem:[%s200 + $0x40] sm:$0xff]
        %v384 = vld [vmem:[%s200 + $0x48] sm:$0xff]
        %v385 = vld [vmem:[%s200 + $0x50] sm:$0xff]
        %v386 = vld [vmem:[%s200 + $0x58] sm:$0xff]
        %v387 = vld [vmem:[%s200 + $0x60] sm:$0xff]
        %v388 = vld [vmem:[%s200 + $0x68] sm:$0xff]
        %v389 = vld [vmem:[%s200 + $0x70] sm:$0xff]
        %v390 = vld [vmem:[%s200 + $0x78] sm:$0xff]
        %v391 = vld [vmem:[%s200 + $0x80] sm:$0xff]
        %v392 = vld [vmem:[%s200 + $0x88] sm:$0xff]
        %v393 = vld [vmem:[%s200 + $0x90] sm:$0xff]
        %v394 = vld [vmem:[%s200 + $0x98] sm:$0xff]
        %v395 = vld [vmem:[%s200 + $0xa0] sm:$0xff]
        %v396 = vld [vmem:[%s200 + $0xa8] sm:$0xff]
        %v397 = vld [vmem:[%s200 + $0xb0] sm:$0xff]
        %v398 = vld [vmem:[%s200 + $0xb8] sm:$0xff]
        %v399 = vld [vmem:[%s200 + $0xc0] sm:$0xff]
        %v400 = vld [vmem:[%s200 + $0xc8] sm:$0xff]
        %v401 = vld [vmem:[%s200 + $0xd0] sm:$0xff]
        %v402 = vld [vmem:[%s200 + $0xd8] sm:$0xff]
        %v403 = vld [vmem:[%s200 + $0xe0] sm:$0xff]
        %v404 = vld [vmem:[%s200 + $0xe8] sm:$0xff]
        %v405 = vld [vmem:[%s200 + $0xf0] sm:$0xff]
        %v406 = vld [vmem:[%s200 + $0xf8] sm:$0xff]
        %v407 = vld [vmem:[%s200 + $0x100] sm:$0xff]
        %v408 = vld [vmem:[%s200 + $0x108] sm:$0xff]
        %v409 = vld [vmem:[%s200 + $0x110] sm:$0xff]
        %v410 = vld [vmem:[%s200 + $0x118] sm:$0xff]
        %v411 = vld [vmem:[%s200 + $0x120] sm:$0xff]
        %v412 = vld [vmem:[%s200 + $0x128] sm:$0xff]
        %v413 = vld [vmem:[%s200 + $0x130] sm:$0xff]
        %v414 = vld [vmem:[%s200 + $0x138] sm:$0xff]
        %v415 = vld [vmem:[%s200 + $0x140] sm:$0xff]
        %v416 = vld [vmem:[%s200 + $0x148] sm:$0xff]
        %v417 = vld [vmem:[%s200 + $0x150] sm:$0xff]
        %v418 = vld [vmem:[%s200 + $0x158] sm:$0xff]
        %v419 = vld [vmem:[%s200 + $0x160] sm:$0xff]
        %v420 = vld [vmem:[%s200 + $0x168] sm:$0xff]
        %v421 = vld [vmem:[%s200 + $0x170] sm:$0xff]
        %v422 = vld [vmem:[%s200 + $0x178] sm:$0xff]
        %v423 = vld [vmem:[%s200 + $0x180] sm:$0xff]
        %v424 = vld [vmem:[%s200 + $0x188] sm:$0xff]
        %v425 = vld [vmem:[%s200 + $0x190] sm:$0xff]
        %v426 = vld [vmem:[%s200 + $0x198] sm:$0xff]
        %v427 = vld [vmem:[%s200 + $0x1a0] sm:$0xff]
        %v428 = vld [vmem:[%s200 + $0x1a8] sm:$0xff]
        %v429 = vld [vmem:[%s200 + $0x1b0] sm:$0xff]
        %v430 = vld [vmem:[%s200 + $0x1b8] sm:$0xff]
        %v431 = vld [vmem:[%s200 + $0x1c0] sm:$0xff]
        %v432 = vld [vmem:[%s200 + $0x1c8] sm:$0xff]
        %v433 = vld [vmem:[%s200 + $0x1d0] sm:$0xff]
        %v434 = vld [vmem:[%s200 + $0x1d8] sm:$0xff]
        %v435 = vld [vmem:[%s200 + $0x1e0] sm:$0xff]
        %v436 = vld [vmem:[%s200 + $0x1e8] sm:$0xff]
        %v437 = vld [vmem:[%s200 + $0x1f0] sm:$0xff]
        %v438 = vld [vmem:[%s200 + $0x1f8] sm:$0xff]
        %v439 = vld [vmem:[%s200 + $0x200] sm:$0xff]
        %v440 = vld [vmem:[%s200 + $0x208] sm:$0xff]
        %v441 = vld [vmem:[%s200 + $0x210] sm:$0xff]
        %v442 = vld [vmem:[%s200 + $0x218] sm:$0xff]
        %v443 = vld [vmem:[%s200 + $0x220] sm:$0xff]
        %v444 = vld [vmem:[%s200 + $0x228] sm:$0xff]
        %v445 = vld [vmem:[%s200 + $0x230] sm:$0xff]
        %v446 = vld [vmem:[%s200 + $0x238] sm:$0xff]
        %v447 = vld [vmem:[%s200 + $0x240] sm:$0xff]
        %v448 = vld [vmem:[%s200 + $0x248] sm:$0xff]
        %v449 = vld [vmem:[%s200 + $0x250] sm:$0xff]
        %v450 = vld [vmem:[%s200 + $0x258] sm:$0xff]
        %v451 = vld [vmem:[%s200 + $0x260] sm:$0xff]
        %v452 = vld [vmem:[%s200 + $0x268] sm:$0xff]
        %v453 = vld [vmem:[%s200 + $0x270] sm:$0xff]
        %v454 = vld [vmem:[%s200 + $0x278] sm:$0xff]
        %v455 = vld [vmem:[%s200 + $0x280] sm:$0xff]
        %v456 = vld [vmem:[%s200 + $0x288] sm:$0xff]
        %v457 = vld [vmem:[%s200 + $0x290] sm:$0xff]
        %v458 = vld [vmem:[%s200 + $0x298] sm:$0xff]
        %v459 = vld [vmem:[%s200 + $0x2a0] sm:$0xff]
        %v460 = vld [vmem:[%s200 + $0x2a8] sm:$0xff]
        %v461 = vld [vmem:[%s200 + $0x2b0] sm:$0xff]
        %v462 = vld [vmem:[%s200 + $0x2b8] sm:$0xff]
        %v463 = vld [vmem:[%s200 + $0x2c0] sm:$0xff]
        %v464 = vld [vmem:[%s200 + $0x2c8] sm:$0xff]
        %v465 = vld [vmem:[%s200 + $0x2d0] sm:$0xff]
        %v466 = vld [vmem:[%s200 + $0x2d8] sm:$0xff]
        %v467 = vld [vmem:[%s200 + $0x2e0] sm:$0xff]
        %v468 = vld [vmem:[%s200 + $0x2e8] sm:$0xff]
        %v469 = vld [vmem:[%s200 + $0x2f0] sm:$0xff]
        %v470 = vld [vmem:[%s200 + $0x2f8] sm:$0xff]
        %v471 = vld [vmem:[%s200 + $0x300] sm:$0xff]
        %v472 = vld [vmem:[%s200 + $0x308] sm:$0xff]
        %v473 = vld [vmem:[%s200 + $0x310] sm:$0xff]
        %v474 = vld [vmem:[%s200 + $0x318] sm:$0xff]
        %v475 = vld [vmem:[%s200 + $0x320] sm:$0xff]
        %v476 = vld [vmem:[%s200 + $0x328] sm:$0xff]
        %v477 = vld [vmem:[%s200 + $0x330] sm:$0xff]
        %v478 = vld [vmem:[%s200 + $0x338] sm:$0xff]
        %v479 = vld [vmem:[%s200 + $0x340] sm:$0xff]
        %v480 = vld [vmem:[%s200 + $0x348] sm:$0xff]
        %v481 = vld [vmem:[%s200 + $0x350] sm:$0xff]
        %v482 = vld [vmem:[%s200 + $0x358] sm:$0xff]
        %v483 = vld [vmem:[%s200 + $0x360] sm:$0xff]
        %v484 = vld [vmem:[%s200 + $0x368] sm:$0xff]
        %v485 = vld [vmem:[%s200 + $0x370] sm:$0xff]
        %v486 = vld [vmem:[%s200 + $0x378] sm:$0xff]
        %v487 = vld [vmem:[%s200 + $0x380] sm:$0xff]
        %v488 = vld [vmem:[%s200 + $0x388] sm:$0xff]
        %v489 = vld [vmem:[%s200 + $0x390] sm:$0xff]
        %v490 = vld [vmem:[%s200 + $0x398] sm:$0xff]
        %v491 = vld [vmem:[%s200 + $0x3a0] sm:$0xff]
        %v492 = vld [vmem:[%s200 + $0x3a8] sm:$0xff]
        %v493 = vld [vmem:[%s200 + $0x3b0] sm:$0xff]
        %v494 = vld [vmem:[%s200 + $0x3b8] sm:$0xff]
        %v495 = vld [vmem:[%s200 + $0x3c0] sm:$0xff]
        %v496 = vld [vmem:[%s200 + $0x3c8] sm:$0xff]
        %v497 = vld [vmem:[%s200 + $0x3d0] sm:$0xff]
        %v498 = vld [vmem:[%s200 + $0x3d8] sm:$0xff]
        %v499 = vld [vmem:[%s200 + $0x3e0] sm:$0xff]
        %v500 = vld [vmem:[%s200 + $0x3e8] sm:$0xff]
        %v501 = vld [vmem:[%s200 + $0x3f0] sm:$0xff]
        %v502 = vld [vmem:[%s200 + $0x3f8] sm:$0xff]
        %v503 = vld [vmem:[%s210] sm:$0xff]
        %v504 = vld [vmem:[%s210 + $0x8] sm:$0xff]
        %v505 = vld [vmem:[%s210 + $0x10] sm:$0xff]
        %v506 = vld [vmem:[%s210 + $0x18] sm:$0xff]
        %v507 = vld [vmem:[%s210 + $0x20] sm:$0xff]
        %v508 = vld [vmem:[%s210 + $0x28] sm:$0xff]
        %v509 = vld [vmem:[%s210 + $0x30] sm:$0xff]
        %v510 = vld [vmem:[%s210 + $0x38] sm:$0xff]
        %v511 = vld [vmem:[%s210 + $0x40] sm:$0xff]
        %v512 = vld [vmem:[%s210 + $0x48] sm:$0xff]
        %v513 = vld [vmem:[%s210 + $0x50] sm:$0xff]
        %v514 = vld [vmem:[%s210 + $0x58] sm:$0xff]
        %v515 = vld [vmem:[%s210 + $0x60] sm:$0xff]
        %v516 = vld [vmem:[%s210 + $0x68] sm:$0xff]
        %v517 = vld [vmem:[%s210 + $0x70] sm:$0xff]
        %v518 = vld [vmem:[%s210 + $0x78] sm:$0xff]
        %v519 = vld [vmem:[%s210 + $0x80] sm:$0xff]
        %v520 = vld [vmem:[%s210 + $0x88] sm:$0xff]
        %v521 = vld [vmem:[%s210 + $0x90] sm:$0xff]
        %v522 = vld [vmem:[%s210 + $0x98] sm:$0xff]
        %v523 = vld [vmem:[%s210 + $0xa0] sm:$0xff]
        %v524 = vld [vmem:[%s210 + $0xa8] sm:$0xff]
        %v525 = vld [vmem:[%s210 + $0xb0] sm:$0xff]
        %v526 = vld [vmem:[%s210 + $0xb8] sm:$0xff]
        %v527 = vld [vmem:[%s210 + $0xc0] sm:$0xff]
        %v528 = vld [vmem:[%s210 + $0xc8] sm:$0xff]
        %v529 = vld [vmem:[%s210 + $0xd0] sm:$0xff]
        %v530 = vld [vmem:[%s210 + $0xd8] sm:$0xff]
        %v531 = vld [vmem:[%s210 + $0xe0] sm:$0xff]
        %v532 = vld [vmem:[%s210 + $0xe8] sm:$0xff]
        %v533 = vld [vmem:[%s210 + $0xf0] sm:$0xff]
        %v534 = vld [vmem:[%s210 + $0xf8] sm:$0xff]
        %v535 = vld [vmem:[%s210 + $0x100] sm:$0xff]
        %v536 = vld [vmem:[%s210 + $0x108] sm:$0xff]
        %v537 = vld [vmem:[%s210 + $0x110] sm:$0xff]
        %v538 = vld [vmem:[%s210 + $0x118] sm:$0xff]
        %v539 = vld [vmem:[%s210 + $0x120] sm:$0xff]
        %v540 = vld [vmem:[%s210 + $0x128] sm:$0xff]
        %v541 = vld [vmem:[%s210 + $0x130] sm:$0xff]
        %v542 = vld [vmem:[%s210 + $0x138] sm:$0xff]
        %v543 = vld [vmem:[%s210 + $0x140] sm:$0xff]
        %v544 = vld [vmem:[%s210 + $0x148] sm:$0xff]
        %v545 = vld [vmem:[%s210 + $0x150] sm:$0xff]
        %v546 = vld [vmem:[%s210 + $0x158] sm:$0xff]
        %v547 = vld [vmem:[%s210 + $0x160] sm:$0xff]
        %v548 = vld [vmem:[%s210 + $0x168] sm:$0xff]
        %v549 = vld [vmem:[%s210 + $0x170] sm:$0xff]
        %v550 = vld [vmem:[%s210 + $0x178] sm:$0xff]
        %v551 = vld [vmem:[%s210 + $0x180] sm:$0xff]
        %v552 = vld [vmem:[%s210 + $0x188] sm:$0xff]
        %v553 = vld [vmem:[%s210 + $0x190] sm:$0xff]
        %v554 = vld [vmem:[%s210 + $0x198] sm:$0xff]
        %v555 = vld [vmem:[%s210 + $0x1a0] sm:$0xff]
        %v556 = vld [vmem:[%s210 + $0x1a8] sm:$0xff]
        %v557 = vld [vmem:[%s210 + $0x1b0] sm:$0xff]
        %v558 = vld [vmem:[%s210 + $0x1b8] sm:$0xff]
        %v559 = vld [vmem:[%s210 + $0x1c0] sm:$0xff]
        %v560 = vld [vmem:[%s210 + $0x1c8] sm:$0xff]
        %v561 = vld [vmem:[%s210 + $0x1d0] sm:$0xff]
        %v562 = vld [vmem:[%s210 + $0x1d8] sm:$0xff]
        %v563 = vld [vmem:[%s210 + $0x1e0] sm:$0xff]
        %v564 = vld [vmem:[%s210 + $0x1e8] sm:$0xff]
        %v565 = vld [vmem:[%s210 + $0x1f0] sm:$0xff]
        %v566 = vld [vmem:[%s210 + $0x1f8] sm:$0xff]
        %v567 = vld [vmem:[%s210 + $0x200] sm:$0xff]
        %v568 = vld [vmem:[%s210 + $0x208] sm:$0xff]
        %v569 = vld [vmem:[%s210 + $0x210] sm:$0xff]
        %v570 = vld [vmem:[%s210 + $0x218] sm:$0xff]
        %v571 = vld [vmem:[%s210 + $0x220] sm:$0xff]
        %v572 = vld [vmem:[%s210 + $0x228] sm:$0xff]
        %v573 = vld [vmem:[%s210 + $0x230] sm:$0xff]
        %v574 = vld [vmem:[%s210 + $0x238] sm:$0xff]
        %v575 = vld [vmem:[%s210 + $0x240] sm:$0xff]
        %v576 = vld [vmem:[%s210 + $0x248] sm:$0xff]
        %v577 = vld [vmem:[%s210 + $0x250] sm:$0xff]
        %v578 = vld [vmem:[%s210 + $0x258] sm:$0xff]
        %v579 = vld [vmem:[%s210 + $0x260] sm:$0xff]
        %v580 = vld [vmem:[%s210 + $0x268] sm:$0xff]
        %v581 = vld [vmem:[%s210 + $0x270] sm:$0xff]
        %v582 = vld [vmem:[%s210 + $0x278] sm:$0xff]
        %v583 = vld [vmem:[%s210 + $0x280] sm:$0xff]
        %v584 = vld [vmem:[%s210 + $0x288] sm:$0xff]
        %v585 = vld [vmem:[%s210 + $0x290] sm:$0xff]
        %v586 = vld [vmem:[%s210 + $0x298] sm:$0xff]
        %v587 = vld [vmem:[%s210 + $0x2a0] sm:$0xff]
        %v588 = vld [vmem:[%s210 + $0x2a8] sm:$0xff]
        %v589 = vld [vmem:[%s210 + $0x2b0] sm:$0xff]
        %v590 = vld [vmem:[%s210 + $0x2b8] sm:$0xff]
        %v591 = vld [vmem:[%s210 + $0x2c0] sm:$0xff]
        %v592 = vld [vmem:[%s210 + $0x2c8] sm:$0xff]
        %v593 = vld [vmem:[%s210 + $0x2d0] sm:$0xff]
        %v594 = vld [vmem:[%s210 + $0x2d8] sm:$0xff]
        %v595 = vld [vmem:[%s210 + $0x2e0] sm:$0xff]
        %v596 = vld [vmem:[%s210 + $0x2e8] sm:$0xff]
        %v597 = vld [vmem:[%s210 + $0x2f0] sm:$0xff]
        %v598 = vld [vmem:[%s210 + $0x2f8] sm:$0xff]
        %v599 = vld [vmem:[%s210 + $0x300] sm:$0xff]
        %v600 = vld [vmem:[%s210 + $0x308] sm:$0xff]
        %v601 = vld [vmem:[%s210 + $0x310] sm:$0xff]
        %v602 = vld [vmem:[%s210 + $0x318] sm:$0xff]
        %v603 = vld [vmem:[%s210 + $0x320] sm:$0xff]
        %v604 = vld [vmem:[%s210 + $0x328] sm:$0xff]
        %v605 = vld [vmem:[%s210 + $0x330] sm:$0xff]
        %v606 = vld [vmem:[%s210 + $0x338] sm:$0xff]
        %v607 = vld [vmem:[%s210 + $0x340] sm:$0xff]
        %v608 = vld [vmem:[%s210 + $0x348] sm:$0xff]
        %v609 = vld [vmem:[%s210 + $0x350] sm:$0xff]
        %v610 = vld [vmem:[%s210 + $0x358] sm:$0xff]
        %v611 = vld [vmem:[%s210 + $0x360] sm:$0xff]
        %v612 = vld [vmem:[%s210 + $0x368] sm:$0xff]
        %v613 = vld [vmem:[%s210 + $0x370] sm:$0xff]
        %v614 = vld [vmem:[%s210 + $0x378] sm:$0xff]
        %v615 = vld [vmem:[%s210 + $0x380] sm:$0xff]
        %v616 = vld [vmem:[%s210 + $0x388] sm:$0xff]
        %v617 = vld [vmem:[%s210 + $0x390] sm:$0xff]
        %v618 = vld [vmem:[%s210 + $0x398] sm:$0xff]
        %v619 = vld [vmem:[%s210 + $0x3a0] sm:$0xff]
        %v620 = vld [vmem:[%s210 + $0x3a8] sm:$0xff]
        %v621 = vld [vmem:[%s210 + $0x3b0] sm:$0xff]
        %v622 = vld [vmem:[%s210 + $0x3b8] sm:$0xff]
        %v623 = vld [vmem:[%s210 + $0x3c0] sm:$0xff]
        %v624 = vld [vmem:[%s210 + $0x3c8] sm:$0xff]
        %v625 = vld [vmem:[%s210 + $0x3d0] sm:$0xff]
        %v626 = vld [vmem:[%s210 + $0x3d8] sm:$0xff]
        %v627 = vld [vmem:[%s210 + $0x3e0] sm:$0xff]
        %v628 = vld [vmem:[%s210 + $0x3e8] sm:$0xff]
        %v629 = vld [vmem:[%s210 + $0x3f0] sm:$0xff]
        %v630 = vld [vmem:[%s210 + $0x3f8] sm:$0xff]
        %631 = vmatpush.msra.mxu0 %v533
        %632 = vmatpush.msra.mxu0 %v531
        %633 = vmatpush.msra.mxu0 %v529
        %634 = vmatpush.msra.mxu0 %v527
        %635 = vmatpush.msra.mxu0 %v525
        %636 = vmatpush.msra.mxu0 %v523
        %637 = vmatpush.msra.mxu0 %v521
        %638 = vmatpush.msra.mxu0 %v519
        %639 = vmatpush.msra.mxu0 %v517
        %640 = vmatpush.msra.mxu0 %v515
        %641 = vmatpush.msra.mxu0 %v513
        %642 = vmatpush.msra.mxu0 %v511
        %643 = vmatpush.msra.mxu0 %v509
        %644 = vmatpush.msra.mxu0 %v507
        %645 = vmatpush.msra.mxu0 %v505
        %646 = vmatpush.msra.mxu0 %v503
        %647 = vmatmul.f32.gmra.mxu0 %v375
        %v648 = vpop.f32.mrf.mxu0
        %v649 = vadd.f32 0.0, %v648
        %650 = vmatmul.f32.gmra.mxu0 %v379
        %v651 = vpop.f32.mrf.mxu0
        %v652 = vadd.f32 0.0, %v651
        %653 = vmatmul.f32.gmra.mxu0 %v383
        %v654 = vpop.f32.mrf.mxu0
        %v655 = vadd.f32 0.0, %v654
        %656 = vmatmul.f32.gmra.mxu0 %v387
        %v657 = vpop.f32.mrf.mxu0
        %v658 = vadd.f32 0.0, %v657
        %659 = vmatmul.f32.gmra.mxu0 %v391
        %v660 = vpop.f32.mrf.mxu0
        %v661 = vadd.f32 0.0, %v660
        %662 = vmatmul.f32.gmra.mxu0 %v395
        %v663 = vpop.f32.mrf.mxu0
        %v664 = vadd.f32 0.0, %v663
        %665 = vmatmul.f32.gmra.mxu0 %v399
        %v666 = vpop.f32.mrf.mxu0
        %v667 = vadd.f32 0.0, %v666
        %668 = vmatmul.f32.gmra.mxu0 %v403
        %v669 = vpop.f32.mrf.mxu0
        %v670 = vadd.f32 0.0, %v669
        %671 = vmatmul.f32.gmra.mxu0 %v407
        %v672 = vpop.f32.mrf.mxu0
        %v673 = vadd.f32 0.0, %v672
        %674 = vmatmul.f32.gmra.mxu0 %v411
        %v675 = vpop.f32.mrf.mxu0
        %v676 = vadd.f32 0.0, %v675
        %677 = vmatmul.f32.gmra.mxu0 %v415
        %v678 = vpop.f32.mrf.mxu0
        %v679 = vadd.f32 0.0, %v678
        %680 = vmatmul.f32.gmra.mxu0 %v419
        %v681 = vpop.f32.mrf.mxu0
        %v682 = vadd.f32 0.0, %v681
        %683 = vmatmul.f32.gmra.mxu0 %v423
        %v684 = vpop.f32.mrf.mxu0
        %v685 = vadd.f32 0.0, %v684
        %686 = vmatmul.f32.gmra.mxu0 %v427
        %v687 = vpop.f32.mrf.mxu0
        %v688 = vadd.f32 0.0, %v687
        %689 = vmatmul.f32.gmra.mxu0 %v431
        %v690 = vpop.f32.mrf.mxu0
        %v691 = vadd.f32 0.0, %v690
        %692 = vmatmul.f32.gmra.mxu0 %v435
        %v693 = vpop.f32.mrf.mxu0
        %v694 = vadd.f32 0.0, %v693
        %695 = vmatmul.f32.gmra.mxu0 %v439
        %v696 = vpop.f32.mrf.mxu0
        %v697 = vadd.f32 0.0, %v696
        %698 = vmatmul.f32.gmra.mxu0 %v443
        %v699 = vpop.f32.mrf.mxu0
        %v700 = vadd.f32 0.0, %v699
        %701 = vmatmul.f32.gmra.mxu0 %v447
        %v702 = vpop.f32.mrf.mxu0
        %v703 = vadd.f32 0.0, %v702
        %704 = vmatmul.f32.gmra.mxu0 %v451
        %v705 = vpop.f32.mrf.mxu0
        %v706 = vadd.f32 0.0, %v705
        %707 = vmatmul.f32.gmra.mxu0 %v455
        %v708 = vpop.f32.mrf.mxu0
        %v709 = vadd.f32 0.0, %v708
        %710 = vmatmul.f32.gmra.mxu0 %v459
        %v711 = vpop.f32.mrf.mxu0
        %v712 = vadd.f32 0.0, %v711
        %713 = vmatmul.f32.gmra.mxu0 %v463
        %v714 = vpop.f32.mrf.mxu0
        %v715 = vadd.f32 0.0, %v714
        %716 = vmatmul.f32.gmra.mxu0 %v467
        %v717 = vpop.f32.mrf.mxu0
        %v718 = vadd.f32 0.0, %v717
        %719 = vmatmul.f32.gmra.mxu0 %v471
        %v720 = vpop.f32.mrf.mxu0
        %v721 = vadd.f32 0.0, %v720
        %722 = vmatmul.f32.gmra.mxu0 %v475
        %v723 = vpop.f32.mrf.mxu0
        %v724 = vadd.f32 0.0, %v723
        %725 = vmatmul.f32.gmra.mxu0 %v479
        %v726 = vpop.f32.mrf.mxu0
        %v727 = vadd.f32 0.0, %v726
        %728 = vmatmul.f32.gmra.mxu0 %v483
        %v729 = vpop.f32.mrf.mxu0
        %v730 = vadd.f32 0.0, %v729
        %731 = vmatmul.f32.gmra.mxu0 %v487
        %v732 = vpop.f32.mrf.mxu0
        %v733 = vadd.f32 0.0, %v732
        %734 = vmatmul.f32.gmra.mxu0 %v491
        %v735 = vpop.f32.mrf.mxu0
        %v736 = vadd.f32 0.0, %v735
        %737 = vmatmul.f32.gmra.mxu0 %v495
        %v738 = vpop.f32.mrf.mxu0
        %v739 = vadd.f32 0.0, %v738
        %740 = vmatmul.f32.gmra.mxu0 %v499
        %v741 = vpop.f32.mrf.mxu0
        %v742 = vadd.f32 0.0, %v741
        %743 = vdwg.mxu0
        %744 = vmatpush.msra.mxu0 %v565
        %745 = vmatpush.msra.mxu0 %v563
        %746 = vmatpush.msra.mxu0 %v561
        %747 = vmatpush.msra.mxu0 %v559
        %748 = vmatpush.msra.mxu0 %v557
        %749 = vmatpush.msra.mxu0 %v555
        %750 = vmatpush.msra.mxu0 %v553
        %751 = vmatpush.msra.mxu0 %v551
        %752 = vmatpush.msra.mxu0 %v549
        %753 = vmatpush.msra.mxu0 %v547
        %754 = vmatpush.msra.mxu0 %v545
        %755 = vmatpush.msra.mxu0 %v543
        %756 = vmatpush.msra.mxu0 %v541
        %757 = vmatpush.msra.mxu0 %v539
        %758 = vmatpush.msra.mxu0 %v537
        %759 = vmatpush.msra.mxu0 %v535
        %760 = vmatmul.f32.gmra.mxu0 %v376
        %v761 = vpop.f32.mrf.mxu0
        %v762 = vadd.f32 %v649, %v761
        %763 = vmatmul.f32.gmra.mxu0 %v380
        %v764 = vpop.f32.mrf.mxu0
        %v765 = vadd.f32 %v652, %v764
        %766 = vmatmul.f32.gmra.mxu0 %v384
        %v767 = vpop.f32.mrf.mxu0
        %v768 = vadd.f32 %v655, %v767
        %769 = vmatmul.f32.gmra.mxu0 %v388
        %v770 = vpop.f32.mrf.mxu0
        %v771 = vadd.f32 %v658, %v770
        %772 = vmatmul.f32.gmra.mxu0 %v392
        %v773 = vpop.f32.mrf.mxu0
        %v774 = vadd.f32 %v661, %v773
        %775 = vmatmul.f32.gmra.mxu0 %v396
        %v776 = vpop.f32.mrf.mxu0
        %v777 = vadd.f32 %v664, %v776
        %778 = vmatmul.f32.gmra.mxu0 %v400
        %v779 = vpop.f32.mrf.mxu0
        %v780 = vadd.f32 %v667, %v779
        %781 = vmatmul.f32.gmra.mxu0 %v404
        %v782 = vpop.f32.mrf.mxu0
        %v783 = vadd.f32 %v670, %v782
        %784 = vmatmul.f32.gmra.mxu0 %v408
        %v785 = vpop.f32.mrf.mxu0
        %v786 = vadd.f32 %v673, %v785
        %787 = vmatmul.f32.gmra.mxu0 %v412
        %v788 = vpop.f32.mrf.mxu0
        %v789 = vadd.f32 %v676, %v788
        %790 = vmatmul.f32.gmra.mxu0 %v416
        %v791 = vpop.f32.mrf.mxu0
        %v792 = vadd.f32 %v679, %v791
        %793 = vmatmul.f32.gmra.mxu0 %v420
        %v794 = vpop.f32.mrf.mxu0
        %v795 = vadd.f32 %v682, %v794
        %796 = vmatmul.f32.gmra.mxu0 %v424
        %v797 = vpop.f32.mrf.mxu0
        %v798 = vadd.f32 %v685, %v797
        %799 = vmatmul.f32.gmra.mxu0 %v428
        %v800 = vpop.f32.mrf.mxu0
        %v801 = vadd.f32 %v688, %v800
        %802 = vmatmul.f32.gmra.mxu0 %v432
        %v803 = vpop.f32.mrf.mxu0
        %v804 = vadd.f32 %v691, %v803
        %805 = vmatmul.f32.gmra.mxu0 %v436
        %v806 = vpop.f32.mrf.mxu0
        %v807 = vadd.f32 %v694, %v806
        %808 = vmatmul.f32.gmra.mxu0 %v440
        %v809 = vpop.f32.mrf.mxu0
        %v810 = vadd.f32 %v697, %v809
        %811 = vmatmul.f32.gmra.mxu0 %v444
        %v812 = vpop.f32.mrf.mxu0
        %v813 = vadd.f32 %v700, %v812
        %814 = vmatmul.f32.gmra.mxu0 %v448
        %v815 = vpop.f32.mrf.mxu0
        %v816 = vadd.f32 %v703, %v815
        %817 = vmatmul.f32.gmra.mxu0 %v452
        %v818 = vpop.f32.mrf.mxu0
        %v819 = vadd.f32 %v706, %v818
        %820 = vmatmul.f32.gmra.mxu0 %v456
        %v821 = vpop.f32.mrf.mxu0
        %v822 = vadd.f32 %v709, %v821
        %823 = vmatmul.f32.gmra.mxu0 %v460
        %v824 = vpop.f32.mrf.mxu0
        %v825 = vadd.f32 %v712, %v824
        %826 = vmatmul.f32.gmra.mxu0 %v464
        %v827 = vpop.f32.mrf.mxu0
        %v828 = vadd.f32 %v715, %v827
        %829 = vmatmul.f32.gmra.mxu0 %v468
        %v830 = vpop.f32.mrf.mxu0
        %v831 = vadd.f32 %v718, %v830
        %832 = vmatmul.f32.gmra.mxu0 %v472
        %v833 = vpop.f32.mrf.mxu0
        %v834 = vadd.f32 %v721, %v833
        %835 = vmatmul.f32.gmra.mxu0 %v476
        %v836 = vpop.f32.mrf.mxu0
        %v837 = vadd.f32 %v724, %v836
        %838 = vmatmul.f32.gmra.mxu0 %v480
        %v839 = vpop.f32.mrf.mxu0
        %v840 = vadd.f32 %v727, %v839
        %841 = vmatmul.f32.gmra.mxu0 %v484
        %v842 = vpop.f32.mrf.mxu0
        %v843 = vadd.f32 %v730, %v842
        %844 = vmatmul.f32.gmra.mxu0 %v488
        %v845 = vpop.f32.mrf.mxu0
        %v846 = vadd.f32 %v733, %v845
        %847 = vmatmul.f32.gmra.mxu0 %v492
        %v848 = vpop.f32.mrf.mxu0
        %v849 = vadd.f32 %v736, %v848
        %850 = vmatmul.f32.gmra.mxu0 %v496
        %v851 = vpop.f32.mrf.mxu0
        %v852 = vadd.f32 %v739, %v851
        %853 = vmatmul.f32.gmra.mxu0 %v500
        %v854 = vpop.f32.mrf.mxu0
        %v855 = vadd.f32 %v742, %v854
        %856 = vdwg.mxu0
        %857 = vmatpush.msra.mxu0 %v597
        %858 = vmatpush.msra.mxu0 %v595
        %859 = vmatpush.msra.mxu0 %v593
        %860 = vmatpush.msra.mxu0 %v591
        %861 = vmatpush.msra.mxu0 %v589
        %862 = vmatpush.msra.mxu0 %v587
        %863 = vmatpush.msra.mxu0 %v585
        %864 = vmatpush.msra.mxu0 %v583
        %865 = vmatpush.msra.mxu0 %v581
        %866 = vmatpush.msra.mxu0 %v579
        %867 = vmatpush.msra.mxu0 %v577
        %868 = vmatpush.msra.mxu0 %v575
        %869 = vmatpush.msra.mxu0 %v573
        %870 = vmatpush.msra.mxu0 %v571
        %871 = vmatpush.msra.mxu0 %v569
        %872 = vmatpush.msra.mxu0 %v567
        %873 = vmatmul.f32.gmra.mxu0 %v377
        %v874 = vpop.f32.mrf.mxu0
        %v875 = vadd.f32 %v762, %v874
        %876 = vmatmul.f32.gmra.mxu0 %v381
        %v877 = vpop.f32.mrf.mxu0
        %v878 = vadd.f32 %v765, %v877
        %879 = vmatmul.f32.gmra.mxu0 %v385
        %v880 = vpop.f32.mrf.mxu0
        %v881 = vadd.f32 %v768, %v880
        %882 = vmatmul.f32.gmra.mxu0 %v389
        %v883 = vpop.f32.mrf.mxu0
        %v884 = vadd.f32 %v771, %v883
        %885 = vmatmul.f32.gmra.mxu0 %v393
        %v886 = vpop.f32.mrf.mxu0
        %v887 = vadd.f32 %v774, %v886
        %888 = vmatmul.f32.gmra.mxu0 %v397
        %v889 = vpop.f32.mrf.mxu0
        %v890 = vadd.f32 %v777, %v889
        %891 = vmatmul.f32.gmra.mxu0 %v401
        %v892 = vpop.f32.mrf.mxu0
        %v893 = vadd.f32 %v780, %v892
        %894 = vmatmul.f32.gmra.mxu0 %v405
        %v895 = vpop.f32.mrf.mxu0
        %v896 = vadd.f32 %v783, %v895
        %897 = vmatmul.f32.gmra.mxu0 %v409
        %v898 = vpop.f32.mrf.mxu0
        %v899 = vadd.f32 %v786, %v898
        %900 = vmatmul.f32.gmra.mxu0 %v413
        %v901 = vpop.f32.mrf.mxu0
        %v902 = vadd.f32 %v789, %v901
        %903 = vmatmul.f32.gmra.mxu0 %v417
        %v904 = vpop.f32.mrf.mxu0
        %v905 = vadd.f32 %v792, %v904
        %906 = vmatmul.f32.gmra.mxu0 %v421
        %v907 = vpop.f32.mrf.mxu0
        %v908 = vadd.f32 %v795, %v907
        %909 = vmatmul.f32.gmra.mxu0 %v425
        %v910 = vpop.f32.mrf.mxu0
        %v911 = vadd.f32 %v798, %v910
        %912 = vmatmul.f32.gmra.mxu0 %v429
        %v913 = vpop.f32.mrf.mxu0
        %v914 = vadd.f32 %v801, %v913
        %915 = vmatmul.f32.gmra.mxu0 %v433
        %v916 = vpop.f32.mrf.mxu0
        %v917 = vadd.f32 %v804, %v916
        %918 = vmatmul.f32.gmra.mxu0 %v437
        %v919 = vpop.f32.mrf.mxu0
        %v920 = vadd.f32 %v807, %v919
        %921 = vmatmul.f32.gmra.mxu0 %v441
        %v922 = vpop.f32.mrf.mxu0
        %v923 = vadd.f32 %v810, %v922
        %924 = vmatmul.f32.gmra.mxu0 %v445
        %v925 = vpop.f32.mrf.mxu0
        %v926 = vadd.f32 %v813, %v925
        %927 = vmatmul.f32.gmra.mxu0 %v449
        %v928 = vpop.f32.mrf.mxu0
        %v929 = vadd.f32 %v816, %v928
        %930 = vmatmul.f32.gmra.mxu0 %v453
        %v931 = vpop.f32.mrf.mxu0
        %v932 = vadd.f32 %v819, %v931
        %933 = vmatmul.f32.gmra.mxu0 %v457
        %v934 = vpop.f32.mrf.mxu0
        %v935 = vadd.f32 %v822, %v934
        %936 = vmatmul.f32.gmra.mxu0 %v461
        %v937 = vpop.f32.mrf.mxu0
        %v938 = vadd.f32 %v825, %v937
        %939 = vmatmul.f32.gmra.mxu0 %v465
        %v940 = vpop.f32.mrf.mxu0
        %v941 = vadd.f32 %v828, %v940
        %942 = vmatmul.f32.gmra.mxu0 %v469
        %v943 = vpop.f32.mrf.mxu0
        %v944 = vadd.f32 %v831, %v943
        %945 = vmatmul.f32.gmra.mxu0 %v473
        %v946 = vpop.f32.mrf.mxu0
        %v947 = vadd.f32 %v834, %v946
        %948 = vmatmul.f32.gmra.mxu0 %v477
        %v949 = vpop.f32.mrf.mxu0
        %v950 = vadd.f32 %v837, %v949
        %951 = vmatmul.f32.gmra.mxu0 %v481
        %v952 = vpop.f32.mrf.mxu0
        %v953 = vadd.f32 %v840, %v952
        %954 = vmatmul.f32.gmra.mxu0 %v485
        %v955 = vpop.f32.mrf.mxu0
        %v956 = vadd.f32 %v843, %v955
        %957 = vmatmul.f32.gmra.mxu0 %v489
        %v958 = vpop.f32.mrf.mxu0
        %v959 = vadd.f32 %v846, %v958
        %960 = vmatmul.f32.gmra.mxu0 %v493
        %v961 = vpop.f32.mrf.mxu0
        %v962 = vadd.f32 %v849, %v961
        %963 = vmatmul.f32.gmra.mxu0 %v497
        %v964 = vpop.f32.mrf.mxu0
        %v965 = vadd.f32 %v852, %v964
        %966 = vmatmul.f32.gmra.mxu0 %v501
        %v967 = vpop.f32.mrf.mxu0
        %v968 = vadd.f32 %v855, %v967
        %969 = vdwg.mxu0
        %970 = vmatpush.msra.mxu0 %v629
        %971 = vmatpush.msra.mxu0 %v627
        %972 = vmatpush.msra.mxu0 %v625
        %973 = vmatpush.msra.mxu0 %v623
        %974 = vmatpush.msra.mxu0 %v621
        %975 = vmatpush.msra.mxu0 %v619
        %976 = vmatpush.msra.mxu0 %v617
        %977 = vmatpush.msra.mxu0 %v615
        %978 = vmatpush.msra.mxu0 %v613
        %979 = vmatpush.msra.mxu0 %v611
        %980 = vmatpush.msra.mxu0 %v609
        %981 = vmatpush.msra.mxu0 %v607
        %982 = vmatpush.msra.mxu0 %v605
        %983 = vmatpush.msra.mxu0 %v603
        %984 = vmatpush.msra.mxu0 %v601
        %985 = vmatpush.msra.mxu0 %v599
        %986 = vmatmul.f32.gmra.mxu0 %v378
        %v987 = vpop.f32.mrf.mxu0
        %v988 = vadd.f32 %v875, %v987
        %989 = vmatmul.f32.gmra.mxu0 %v382
        %v990 = vpop.f32.mrf.mxu0
        %v991 = vadd.f32 %v878, %v990
        %992 = vmatmul.f32.gmra.mxu0 %v386
        %v993 = vpop.f32.mrf.mxu0
        %v994 = vadd.f32 %v881, %v993
        %995 = vmatmul.f32.gmra.mxu0 %v390
        %v996 = vpop.f32.mrf.mxu0
        %v997 = vadd.f32 %v884, %v996
        %998 = vmatmul.f32.gmra.mxu0 %v394
        %v999 = vpop.f32.mrf.mxu0
        %v1000 = vadd.f32 %v887, %v999
        %1001 = vmatmul.f32.gmra.mxu0 %v398
        %v1002 = vpop.f32.mrf.mxu0
        %v1003 = vadd.f32 %v890, %v1002
        %1004 = vmatmul.f32.gmra.mxu0 %v402
        %v1005 = vpop.f32.mrf.mxu0
        %v1006 = vadd.f32 %v893, %v1005
        %1007 = vmatmul.f32.gmra.mxu0 %v406
        %v1008 = vpop.f32.mrf.mxu0
        %v1009 = vadd.f32 %v896, %v1008
        %1010 = vmatmul.f32.gmra.mxu0 %v410
        %v1011 = vpop.f32.mrf.mxu0
        %v1012 = vadd.f32 %v899, %v1011
        %1013 = vmatmul.f32.gmra.mxu0 %v414
        %v1014 = vpop.f32.mrf.mxu0
        %v1015 = vadd.f32 %v902, %v1014
        %1016 = vmatmul.f32.gmra.mxu0 %v418
        %v1017 = vpop.f32.mrf.mxu0
        %v1018 = vadd.f32 %v905, %v1017
        %1019 = vmatmul.f32.gmra.mxu0 %v422
        %v1020 = vpop.f32.mrf.mxu0
        %v1021 = vadd.f32 %v908, %v1020
        %1022 = vmatmul.f32.gmra.mxu0 %v426
        %v1023 = vpop.f32.mrf.mxu0
        %v1024 = vadd.f32 %v911, %v1023
        %1025 = vmatmul.f32.gmra.mxu0 %v430
        %v1026 = vpop.f32.mrf.mxu0
        %v1027 = vadd.f32 %v914, %v1026
        %1028 = vmatmul.f32.gmra.mxu0 %v434
        %v1029 = vpop.f32.mrf.mxu0
        %v1030 = vadd.f32 %v917, %v1029
        %1031 = vmatmul.f32.gmra.mxu0 %v438
        %v1032 = vpop.f32.mrf.mxu0
        %v1033 = vadd.f32 %v920, %v1032
        %1034 = vmatmul.f32.gmra.mxu0 %v442
        %v1035 = vpop.f32.mrf.mxu0
        %v1036 = vadd.f32 %v923, %v1035
        %1037 = vmatmul.f32.gmra.mxu0 %v446
        %v1038 = vpop.f32.mrf.mxu0
        %v1039 = vadd.f32 %v926, %v1038
        %1040 = vmatmul.f32.gmra.mxu0 %v450
        %v1041 = vpop.f32.mrf.mxu0
        %v1042 = vadd.f32 %v929, %v1041
        %1043 = vmatmul.f32.gmra.mxu0 %v454
        %v1044 = vpop.f32.mrf.mxu0
        %v1045 = vadd.f32 %v932, %v1044
        %1046 = vmatmul.f32.gmra.mxu0 %v458
        %v1047 = vpop.f32.mrf.mxu0
        %v1048 = vadd.f32 %v935, %v1047
        %1049 = vmatmul.f32.gmra.mxu0 %v462
        %v1050 = vpop.f32.mrf.mxu0
        %v1051 = vadd.f32 %v938, %v1050
        %1052 = vmatmul.f32.gmra.mxu0 %v466
        %v1053 = vpop.f32.mrf.mxu0
        %v1054 = vadd.f32 %v941, %v1053
        %1055 = vmatmul.f32.gmra.mxu0 %v470
        %v1056 = vpop.f32.mrf.mxu0
        %v1057 = vadd.f32 %v944, %v1056
        %1058 = vmatmul.f32.gmra.mxu0 %v474
        %v1059 = vpop.f32.mrf.mxu0
        %v1060 = vadd.f32 %v947, %v1059
        %1061 = vmatmul.f32.gmra.mxu0 %v478
        %v1062 = vpop.f32.mrf.mxu0
        %v1063 = vadd.f32 %v950, %v1062
        %1064 = vmatmul.f32.gmra.mxu0 %v482
        %v1065 = vpop.f32.mrf.mxu0
        %v1066 = vadd.f32 %v953, %v1065
        %1067 = vmatmul.f32.gmra.mxu0 %v486
        %v1068 = vpop.f32.mrf.mxu0
        %v1069 = vadd.f32 %v956, %v1068
        %1070 = vmatmul.f32.gmra.mxu0 %v490
        %v1071 = vpop.f32.mrf.mxu0
        %v1072 = vadd.f32 %v959, %v1071
        %1073 = vmatmul.f32.gmra.mxu0 %v494
        %v1074 = vpop.f32.mrf.mxu0
        %v1075 = vadd.f32 %v962, %v1074
        %1076 = vmatmul.f32.gmra.mxu0 %v498
        %v1077 = vpop.f32.mrf.mxu0
        %v1078 = vadd.f32 %v965, %v1077
        %1079 = vmatmul.f32.gmra.mxu0 %v502
        %v1080 = vpop.f32.mrf.mxu0
        %v1081 = vadd.f32 %v968, %v1080
        %1082 = vdwg.mxu0
        %1083 = vmatpush.msra.mxu0 %v534
        %1084 = vmatpush.msra.mxu0 %v532
        %1085 = vmatpush.msra.mxu0 %v530
        %1086 = vmatpush.msra.mxu0 %v528
        %1087 = vmatpush.msra.mxu0 %v526
        %1088 = vmatpush.msra.mxu0 %v524
        %1089 = vmatpush.msra.mxu0 %v522
        %1090 = vmatpush.msra.mxu0 %v520
        %1091 = vmatpush.msra.mxu0 %v518
        %1092 = vmatpush.msra.mxu0 %v516
        %1093 = vmatpush.msra.mxu0 %v514
        %1094 = vmatpush.msra.mxu0 %v512
        %1095 = vmatpush.msra.mxu0 %v510
        %1096 = vmatpush.msra.mxu0 %v508
        %1097 = vmatpush.msra.mxu0 %v506
        %1098 = vmatpush.msra.mxu0 %v504
        %1099 = vmatmul.f32.gmra.mxu0 %v375
        %v1100 = vpop.f32.mrf.mxu0
        %v1101 = vadd.f32 0.0, %v1100
        %1102 = vmatmul.f32.gmra.mxu0 %v379
        %v1103 = vpop.f32.mrf.mxu0
        %v1104 = vadd.f32 0.0, %v1103
        %1105 = vmatmul.f32.gmra.mxu0 %v383
        %v1106 = vpop.f32.mrf.mxu0
        %v1107 = vadd.f32 0.0, %v1106
        %1108 = vmatmul.f32.gmra.mxu0 %v387
        %v1109 = vpop.f32.mrf.mxu0
        %v1110 = vadd.f32 0.0, %v1109
        %1111 = vmatmul.f32.gmra.mxu0 %v391
        %v1112 = vpop.f32.mrf.mxu0
        %v1113 = vadd.f32 0.0, %v1112
        %1114 = vmatmul.f32.gmra.mxu0 %v395
        %v1115 = vpop.f32.mrf.mxu0
        %v1116 = vadd.f32 0.0, %v1115
        %1117 = vmatmul.f32.gmra.mxu0 %v399
        %v1118 = vpop.f32.mrf.mxu0
        %v1119 = vadd.f32 0.0, %v1118
        %1120 = vmatmul.f32.gmra.mxu0 %v403
        %v1121 = vpop.f32.mrf.mxu0
        %v1122 = vadd.f32 0.0, %v1121
        %1123 = vmatmul.f32.gmra.mxu0 %v407
        %v1124 = vpop.f32.mrf.mxu0
        %v1125 = vadd.f32 0.0, %v1124
        %1126 = vmatmul.f32.gmra.mxu0 %v411
        %v1127 = vpop.f32.mrf.mxu0
        %v1128 = vadd.f32 0.0, %v1127
        %1129 = vmatmul.f32.gmra.mxu0 %v415
        %v1130 = vpop.f32.mrf.mxu0
        %v1131 = vadd.f32 0.0, %v1130
        %1132 = vmatmul.f32.gmra.mxu0 %v419
        %v1133 = vpop.f32.mrf.mxu0
        %v1134 = vadd.f32 0.0, %v1133
        %1135 = vmatmul.f32.gmra.mxu0 %v423
        %v1136 = vpop.f32.mrf.mxu0
        %v1137 = vadd.f32 0.0, %v1136
        %1138 = vmatmul.f32.gmra.mxu0 %v427
        %v1139 = vpop.f32.mrf.mxu0
        %v1140 = vadd.f32 0.0, %v1139
        %1141 = vmatmul.f32.gmra.mxu0 %v431
        %v1142 = vpop.f32.mrf.mxu0
        %v1143 = vadd.f32 0.0, %v1142
        %1144 = vmatmul.f32.gmra.mxu0 %v435
        %v1145 = vpop.f32.mrf.mxu0
        %v1146 = vadd.f32 0.0, %v1145
        %1147 = vmatmul.f32.gmra.mxu0 %v439
        %v1148 = vpop.f32.mrf.mxu0
        %v1149 = vadd.f32 0.0, %v1148
        %1150 = vmatmul.f32.gmra.mxu0 %v443
        %v1151 = vpop.f32.mrf.mxu0
        %v1152 = vadd.f32 0.0, %v1151
        %1153 = vmatmul.f32.gmra.mxu0 %v447
        %v1154 = vpop.f32.mrf.mxu0
        %v1155 = vadd.f32 0.0, %v1154
        %1156 = vmatmul.f32.gmra.mxu0 %v451
        %v1157 = vpop.f32.mrf.mxu0
        %v1158 = vadd.f32 0.0, %v1157
        %1159 = vmatmul.f32.gmra.mxu0 %v455
        %v1160 = vpop.f32.mrf.mxu0
        %v1161 = vadd.f32 0.0, %v1160
        %1162 = vmatmul.f32.gmra.mxu0 %v459
        %v1163 = vpop.f32.mrf.mxu0
        %v1164 = vadd.f32 0.0, %v1163
        %1165 = vmatmul.f32.gmra.mxu0 %v463
        %v1166 = vpop.f32.mrf.mxu0
        %v1167 = vadd.f32 0.0, %v1166
        %1168 = vmatmul.f32.gmra.mxu0 %v467
        %v1169 = vpop.f32.mrf.mxu0
        %v1170 = vadd.f32 0.0, %v1169
        %1171 = vmatmul.f32.gmra.mxu0 %v471
        %v1172 = vpop.f32.mrf.mxu0
        %v1173 = vadd.f32 0.0, %v1172
        %1174 = vmatmul.f32.gmra.mxu0 %v475
        %v1175 = vpop.f32.mrf.mxu0
        %v1176 = vadd.f32 0.0, %v1175
        %1177 = vmatmul.f32.gmra.mxu0 %v479
        %v1178 = vpop.f32.mrf.mxu0
        %v1179 = vadd.f32 0.0, %v1178
        %1180 = vmatmul.f32.gmra.mxu0 %v483
        %v1181 = vpop.f32.mrf.mxu0
        %v1182 = vadd.f32 0.0, %v1181
        %1183 = vmatmul.f32.gmra.mxu0 %v487
        %v1184 = vpop.f32.mrf.mxu0
        %v1185 = vadd.f32 0.0, %v1184
        %1186 = vmatmul.f32.gmra.mxu0 %v491
        %v1187 = vpop.f32.mrf.mxu0
        %v1188 = vadd.f32 0.0, %v1187
        %1189 = vmatmul.f32.gmra.mxu0 %v495
        %v1190 = vpop.f32.mrf.mxu0
        %v1191 = vadd.f32 0.0, %v1190
        %1192 = vmatmul.f32.gmra.mxu0 %v499
        %v1193 = vpop.f32.mrf.mxu0
        %v1194 = vadd.f32 0.0, %v1193
        %1195 = vdwg.mxu0
        %1196 = vmatpush.msra.mxu0 %v566
        %1197 = vmatpush.msra.mxu0 %v564
        %1198 = vmatpush.msra.mxu0 %v562
        %1199 = vmatpush.msra.mxu0 %v560
        %1200 = vmatpush.msra.mxu0 %v558
        %1201 = vmatpush.msra.mxu0 %v556
        %1202 = vmatpush.msra.mxu0 %v554
        %1203 = vmatpush.msra.mxu0 %v552
        %1204 = vmatpush.msra.mxu0 %v550
        %1205 = vmatpush.msra.mxu0 %v548
        %1206 = vmatpush.msra.mxu0 %v546
        %1207 = vmatpush.msra.mxu0 %v544
        %1208 = vmatpush.msra.mxu0 %v542
        %1209 = vmatpush.msra.mxu0 %v540
        %1210 = vmatpush.msra.mxu0 %v538
        %1211 = vmatpush.msra.mxu0 %v536
        %1212 = vmatmul.f32.gmra.mxu0 %v376
        %v1213 = vpop.f32.mrf.mxu0
        %v1214 = vadd.f32 %v1101, %v1213
        %1215 = vmatmul.f32.gmra.mxu0 %v380
        %v1216 = vpop.f32.mrf.mxu0
        %v1217 = vadd.f32 %v1104, %v1216
        %1218 = vmatmul.f32.gmra.mxu0 %v384
        %v1219 = vpop.f32.mrf.mxu0
        %v1220 = vadd.f32 %v1107, %v1219
        %1221 = vmatmul.f32.gmra.mxu0 %v388
        %v1222 = vpop.f32.mrf.mxu0
        %v1223 = vadd.f32 %v1110, %v1222
        %1224 = vmatmul.f32.gmra.mxu0 %v392
        %v1225 = vpop.f32.mrf.mxu0
        %v1226 = vadd.f32 %v1113, %v1225
        %1227 = vmatmul.f32.gmra.mxu0 %v396
        %v1228 = vpop.f32.mrf.mxu0
        %v1229 = vadd.f32 %v1116, %v1228
        %1230 = vmatmul.f32.gmra.mxu0 %v400
        %v1231 = vpop.f32.mrf.mxu0
        %v1232 = vadd.f32 %v1119, %v1231
        %1233 = vmatmul.f32.gmra.mxu0 %v404
        %v1234 = vpop.f32.mrf.mxu0
        %v1235 = vadd.f32 %v1122, %v1234
        %1236 = vmatmul.f32.gmra.mxu0 %v408
        %v1237 = vpop.f32.mrf.mxu0
        %v1238 = vadd.f32 %v1125, %v1237
        %1239 = vmatmul.f32.gmra.mxu0 %v412
        %v1240 = vpop.f32.mrf.mxu0
        %v1241 = vadd.f32 %v1128, %v1240
        %1242 = vmatmul.f32.gmra.mxu0 %v416
        %v1243 = vpop.f32.mrf.mxu0
        %v1244 = vadd.f32 %v1131, %v1243
        %1245 = vmatmul.f32.gmra.mxu0 %v420
        %v1246 = vpop.f32.mrf.mxu0
        %v1247 = vadd.f32 %v1134, %v1246
        %1248 = vmatmul.f32.gmra.mxu0 %v424
        %v1249 = vpop.f32.mrf.mxu0
        %v1250 = vadd.f32 %v1137, %v1249
        %1251 = vmatmul.f32.gmra.mxu0 %v428
        %v1252 = vpop.f32.mrf.mxu0
        %v1253 = vadd.f32 %v1140, %v1252
        %1254 = vmatmul.f32.gmra.mxu0 %v432
        %v1255 = vpop.f32.mrf.mxu0
        %v1256 = vadd.f32 %v1143, %v1255
        %1257 = vmatmul.f32.gmra.mxu0 %v436
        %v1258 = vpop.f32.mrf.mxu0
        %v1259 = vadd.f32 %v1146, %v1258
        %1260 = vmatmul.f32.gmra.mxu0 %v440
        %v1261 = vpop.f32.mrf.mxu0
        %v1262 = vadd.f32 %v1149, %v1261
        %1263 = vmatmul.f32.gmra.mxu0 %v444
        %v1264 = vpop.f32.mrf.mxu0
        %v1265 = vadd.f32 %v1152, %v1264
        %1266 = vmatmul.f32.gmra.mxu0 %v448
        %v1267 = vpop.f32.mrf.mxu0
        %v1268 = vadd.f32 %v1155, %v1267
        %1269 = vmatmul.f32.gmra.mxu0 %v452
        %v1270 = vpop.f32.mrf.mxu0
        %v1271 = vadd.f32 %v1158, %v1270
        %1272 = vmatmul.f32.gmra.mxu0 %v456
        %v1273 = vpop.f32.mrf.mxu0
        %v1274 = vadd.f32 %v1161, %v1273
        %1275 = vmatmul.f32.gmra.mxu0 %v460
        %v1276 = vpop.f32.mrf.mxu0
        %v1277 = vadd.f32 %v1164, %v1276
        %1278 = vmatmul.f32.gmra.mxu0 %v464
        %v1279 = vpop.f32.mrf.mxu0
        %v1280 = vadd.f32 %v1167, %v1279
        %1281 = vmatmul.f32.gmra.mxu0 %v468
        %v1282 = vpop.f32.mrf.mxu0
        %v1283 = vadd.f32 %v1170, %v1282
        %1284 = vmatmul.f32.gmra.mxu0 %v472
        %v1285 = vpop.f32.mrf.mxu0
        %v1286 = vadd.f32 %v1173, %v1285
        %1287 = vmatmul.f32.gmra.mxu0 %v476
        %v1288 = vpop.f32.mrf.mxu0
        %v1289 = vadd.f32 %v1176, %v1288
        %1290 = vmatmul.f32.gmra.mxu0 %v480
        %v1291 = vpop.f32.mrf.mxu0
        %v1292 = vadd.f32 %v1179, %v1291
        %1293 = vmatmul.f32.gmra.mxu0 %v484
        %v1294 = vpop.f32.mrf.mxu0
        %v1295 = vadd.f32 %v1182, %v1294
        %1296 = vmatmul.f32.gmra.mxu0 %v488
        %v1297 = vpop.f32.mrf.mxu0
        %v1298 = vadd.f32 %v1185, %v1297
        %1299 = vmatmul.f32.gmra.mxu0 %v492
        %v1300 = vpop.f32.mrf.mxu0
        %v1301 = vadd.f32 %v1188, %v1300
        %1302 = vmatmul.f32.gmra.mxu0 %v496
        %v1303 = vpop.f32.mrf.mxu0
        %v1304 = vadd.f32 %v1191, %v1303
        %1305 = vmatmul.f32.gmra.mxu0 %v500
        %v1306 = vpop.f32.mrf.mxu0
        %v1307 = vadd.f32 %v1194, %v1306
        %1308 = vdwg.mxu0
        %1309 = vmatpush.msra.mxu0 %v598
        %1310 = vmatpush.msra.mxu0 %v596
        %1311 = vmatpush.msra.mxu0 %v594
        %1312 = vmatpush.msra.mxu0 %v592
        %1313 = vmatpush.msra.mxu0 %v590
        %1314 = vmatpush.msra.mxu0 %v588
        %1315 = vmatpush.msra.mxu0 %v586
        %1316 = vmatpush.msra.mxu0 %v584
        %1317 = vmatpush.msra.mxu0 %v582
        %1318 = vmatpush.msra.mxu0 %v580
        %1319 = vmatpush.msra.mxu0 %v578
        %1320 = vmatpush.msra.mxu0 %v576
        %1321 = vmatpush.msra.mxu0 %v574
        %1322 = vmatpush.msra.mxu0 %v572
        %1323 = vmatpush.msra.mxu0 %v570
        %1324 = vmatpush.msra.mxu0 %v568
        %1325 = vmatmul.f32.gmra.mxu0 %v377
        %v1326 = vpop.f32.mrf.mxu0
        %v1327 = vadd.f32 %v1214, %v1326
        %1328 = vmatmul.f32.gmra.mxu0 %v381
        %v1329 = vpop.f32.mrf.mxu0
        %v1330 = vadd.f32 %v1217, %v1329
        %1331 = vmatmul.f32.gmra.mxu0 %v385
        %v1332 = vpop.f32.mrf.mxu0
        %v1333 = vadd.f32 %v1220, %v1332
        %1334 = vmatmul.f32.gmra.mxu0 %v389
        %v1335 = vpop.f32.mrf.mxu0
        %v1336 = vadd.f32 %v1223, %v1335
        %1337 = vmatmul.f32.gmra.mxu0 %v393
        %v1338 = vpop.f32.mrf.mxu0
        %v1339 = vadd.f32 %v1226, %v1338
        %1340 = vmatmul.f32.gmra.mxu0 %v397
        %v1341 = vpop.f32.mrf.mxu0
        %v1342 = vadd.f32 %v1229, %v1341
        %1343 = vmatmul.f32.gmra.mxu0 %v401
        %v1344 = vpop.f32.mrf.mxu0
        %v1345 = vadd.f32 %v1232, %v1344
        %1346 = vmatmul.f32.gmra.mxu0 %v405
        %v1347 = vpop.f32.mrf.mxu0
        %v1348 = vadd.f32 %v1235, %v1347
        %1349 = vmatmul.f32.gmra.mxu0 %v409
        %v1350 = vpop.f32.mrf.mxu0
        %v1351 = vadd.f32 %v1238, %v1350
        %1352 = vmatmul.f32.gmra.mxu0 %v413
        %v1353 = vpop.f32.mrf.mxu0
        %v1354 = vadd.f32 %v1241, %v1353
        %1355 = vmatmul.f32.gmra.mxu0 %v417
        %v1356 = vpop.f32.mrf.mxu0
        %v1357 = vadd.f32 %v1244, %v1356
        %1358 = vmatmul.f32.gmra.mxu0 %v421
        %v1359 = vpop.f32.mrf.mxu0
        %v1360 = vadd.f32 %v1247, %v1359
        %1361 = vmatmul.f32.gmra.mxu0 %v425
        %v1362 = vpop.f32.mrf.mxu0
        %v1363 = vadd.f32 %v1250, %v1362
        %1364 = vmatmul.f32.gmra.mxu0 %v429
        %v1365 = vpop.f32.mrf.mxu0
        %v1366 = vadd.f32 %v1253, %v1365
        %1367 = vmatmul.f32.gmra.mxu0 %v433
        %v1368 = vpop.f32.mrf.mxu0
        %v1369 = vadd.f32 %v1256, %v1368
        %1370 = vmatmul.f32.gmra.mxu0 %v437
        %v1371 = vpop.f32.mrf.mxu0
        %v1372 = vadd.f32 %v1259, %v1371
        %1373 = vmatmul.f32.gmra.mxu0 %v441
        %v1374 = vpop.f32.mrf.mxu0
        %v1375 = vadd.f32 %v1262, %v1374
        %1376 = vmatmul.f32.gmra.mxu0 %v445
        %v1377 = vpop.f32.mrf.mxu0
        %v1378 = vadd.f32 %v1265, %v1377
        %1379 = vmatmul.f32.gmra.mxu0 %v449
        %v1380 = vpop.f32.mrf.mxu0
        %v1381 = vadd.f32 %v1268, %v1380
        %1382 = vmatmul.f32.gmra.mxu0 %v453
        %v1383 = vpop.f32.mrf.mxu0
        %v1384 = vadd.f32 %v1271, %v1383
        %1385 = vmatmul.f32.gmra.mxu0 %v457
        %v1386 = vpop.f32.mrf.mxu0
        %v1387 = vadd.f32 %v1274, %v1386
        %1388 = vmatmul.f32.gmra.mxu0 %v461
        %v1389 = vpop.f32.mrf.mxu0
        %v1390 = vadd.f32 %v1277, %v1389
        %1391 = vmatmul.f32.gmra.mxu0 %v465
        %v1392 = vpop.f32.mrf.mxu0
        %v1393 = vadd.f32 %v1280, %v1392
        %1394 = vmatmul.f32.gmra.mxu0 %v469
        %v1395 = vpop.f32.mrf.mxu0
        %v1396 = vadd.f32 %v1283, %v1395
        %1397 = vmatmul.f32.gmra.mxu0 %v473
        %v1398 = vpop.f32.mrf.mxu0
        %v1399 = vadd.f32 %v1286, %v1398
        %1400 = vmatmul.f32.gmra.mxu0 %v477
        %v1401 = vpop.f32.mrf.mxu0
        %v1402 = vadd.f32 %v1289, %v1401
        %1403 = vmatmul.f32.gmra.mxu0 %v481
        %v1404 = vpop.f32.mrf.mxu0
        %v1405 = vadd.f32 %v1292, %v1404
        %1406 = vmatmul.f32.gmra.mxu0 %v485
        %v1407 = vpop.f32.mrf.mxu0
        %v1408 = vadd.f32 %v1295, %v1407
        %1409 = vmatmul.f32.gmra.mxu0 %v489
        %v1410 = vpop.f32.mrf.mxu0
        %v1411 = vadd.f32 %v1298, %v1410
        %1412 = vmatmul.f32.gmra.mxu0 %v493
        %v1413 = vpop.f32.mrf.mxu0
        %v1414 = vadd.f32 %v1301, %v1413
        %1415 = vmatmul.f32.gmra.mxu0 %v497
        %v1416 = vpop.f32.mrf.mxu0
        %v1417 = vadd.f32 %v1304, %v1416
        %1418 = vmatmul.f32.gmra.mxu0 %v501
        %v1419 = vpop.f32.mrf.mxu0
        %v1420 = vadd.f32 %v1307, %v1419
        %1421 = vdwg.mxu0
        %1422 = vmatpush.msra.mxu0 %v630
        %1423 = vmatpush.msra.mxu0 %v628
        %1424 = vmatpush.msra.mxu0 %v626
        %1425 = vmatpush.msra.mxu0 %v624
        %1426 = vmatpush.msra.mxu0 %v622
        %1427 = vmatpush.msra.mxu0 %v620
        %1428 = vmatpush.msra.mxu0 %v618
        %1429 = vmatpush.msra.mxu0 %v616
        %1430 = vmatpush.msra.mxu0 %v614
        %1431 = vmatpush.msra.mxu0 %v612
        %1432 = vmatpush.msra.mxu0 %v610
        %1433 = vmatpush.msra.mxu0 %v608
        %1434 = vmatpush.msra.mxu0 %v606
        %1435 = vmatpush.msra.mxu0 %v604
        %1436 = vmatpush.msra.mxu0 %v602
        %1437 = vmatpush.msra.mxu0 %v600
        %1438 = vmatmul.f32.gmra.mxu0 %v378
        %v1439 = vpop.f32.mrf.mxu0
        %v1440 = vadd.f32 %v1327, %v1439
        %1441 = vmatmul.f32.gmra.mxu0 %v382
        %v1442 = vpop.f32.mrf.mxu0
        %v1443 = vadd.f32 %v1330, %v1442
        %1444 = vmatmul.f32.gmra.mxu0 %v386
        %v1445 = vpop.f32.mrf.mxu0
        %v1446 = vadd.f32 %v1333, %v1445
        %1447 = vmatmul.f32.gmra.mxu0 %v390
        %v1448 = vpop.f32.mrf.mxu0
        %v1449 = vadd.f32 %v1336, %v1448
        %1450 = vmatmul.f32.gmra.mxu0 %v394
        %v1451 = vpop.f32.mrf.mxu0
        %v1452 = vadd.f32 %v1339, %v1451
        %1453 = vmatmul.f32.gmra.mxu0 %v398
        %v1454 = vpop.f32.mrf.mxu0
        %v1455 = vadd.f32 %v1342, %v1454
        %1456 = vmatmul.f32.gmra.mxu0 %v402
        %v1457 = vpop.f32.mrf.mxu0
        %v1458 = vadd.f32 %v1345, %v1457
        %1459 = vmatmul.f32.gmra.mxu0 %v406
        %v1460 = vpop.f32.mrf.mxu0
        %v1461 = vadd.f32 %v1348, %v1460
        %1462 = vmatmul.f32.gmra.mxu0 %v410
        %v1463 = vpop.f32.mrf.mxu0
        %v1464 = vadd.f32 %v1351, %v1463
        %1465 = vmatmul.f32.gmra.mxu0 %v414
        %v1466 = vpop.f32.mrf.mxu0
        %v1467 = vadd.f32 %v1354, %v1466
        %1468 = vmatmul.f32.gmra.mxu0 %v418
        %v1469 = vpop.f32.mrf.mxu0
        %v1470 = vadd.f32 %v1357, %v1469
        %1471 = vmatmul.f32.gmra.mxu0 %v422
        %v1472 = vpop.f32.mrf.mxu0
        %v1473 = vadd.f32 %v1360, %v1472
        %1474 = vmatmul.f32.gmra.mxu0 %v426
        %v1475 = vpop.f32.mrf.mxu0
        %v1476 = vadd.f32 %v1363, %v1475
        %1477 = vmatmul.f32.gmra.mxu0 %v430
        %v1478 = vpop.f32.mrf.mxu0
        %v1479 = vadd.f32 %v1366, %v1478
        %1480 = vmatmul.f32.gmra.mxu0 %v434
        %v1481 = vpop.f32.mrf.mxu0
        %v1482 = vadd.f32 %v1369, %v1481
        %1483 = vmatmul.f32.gmra.mxu0 %v438
        %v1484 = vpop.f32.mrf.mxu0
        %v1485 = vadd.f32 %v1372, %v1484
        %1486 = vmatmul.f32.gmra.mxu0 %v442
        %v1487 = vpop.f32.mrf.mxu0
        %v1488 = vadd.f32 %v1375, %v1487
        %1489 = vmatmul.f32.gmra.mxu0 %v446
        %v1490 = vpop.f32.mrf.mxu0
        %v1491 = vadd.f32 %v1378, %v1490
        %1492 = vmatmul.f32.gmra.mxu0 %v450
        %v1493 = vpop.f32.mrf.mxu0
        %v1494 = vadd.f32 %v1381, %v1493
        %1495 = vmatmul.f32.gmra.mxu0 %v454
        %v1496 = vpop.f32.mrf.mxu0
        %v1497 = vadd.f32 %v1384, %v1496
        %1498 = vmatmul.f32.gmra.mxu0 %v458
        %v1499 = vpop.f32.mrf.mxu0
        %v1500 = vadd.f32 %v1387, %v1499
        %1501 = vmatmul.f32.gmra.mxu0 %v462
        %v1502 = vpop.f32.mrf.mxu0
        %v1503 = vadd.f32 %v1390, %v1502
        %1504 = vmatmul.f32.gmra.mxu0 %v466
        %v1505 = vpop.f32.mrf.mxu0
        %v1506 = vadd.f32 %v1393, %v1505
        %1507 = vmatmul.f32.gmra.mxu0 %v470
        %v1508 = vpop.f32.mrf.mxu0
        %v1509 = vadd.f32 %v1396, %v1508
        %1510 = vmatmul.f32.gmra.mxu0 %v474
        %v1511 = vpop.f32.mrf.mxu0
        %v1512 = vadd.f32 %v1399, %v1511
        %1513 = vmatmul.f32.gmra.mxu0 %v478
        %v1514 = vpop.f32.mrf.mxu0
        %v1515 = vadd.f32 %v1402, %v1514
        %1516 = vmatmul.f32.gmra.mxu0 %v482
        %v1517 = vpop.f32.mrf.mxu0
        %v1518 = vadd.f32 %v1405, %v1517
        %1519 = vmatmul.f32.gmra.mxu0 %v486
        %v1520 = vpop.f32.mrf.mxu0
        %v1521 = vadd.f32 %v1408, %v1520
        %1522 = vmatmul.f32.gmra.mxu0 %v490
        %v1523 = vpop.f32.mrf.mxu0
        %v1524 = vadd.f32 %v1411, %v1523
        %1525 = vmatmul.f32.gmra.mxu0 %v494
        %v1526 = vpop.f32.mrf.mxu0
        %v1527 = vadd.f32 %v1414, %v1526
        %1528 = vmatmul.f32.gmra.mxu0 %v498
        %v1529 = vpop.f32.mrf.mxu0
        %v1530 = vadd.f32 %v1417, %v1529
        %1531 = vmatmul.f32.gmra.mxu0 %v502
        %v1532 = vpop.f32.mrf.mxu0
        %v1533 = vadd.f32 %v1420, %v1532
        %1534 = vdwg.mxu0
        %v1535 = vadd.f32 %v311, %v988
        %v1536 = vadd.f32 %v312, %v1440
        %v1537 = vadd.f32 %v313, %v991
        %v1538 = vadd.f32 %v314, %v1443
        %v1539 = vadd.f32 %v315, %v994
        %v1540 = vadd.f32 %v316, %v1446
        %v1541 = vadd.f32 %v317, %v997
        %v1542 = vadd.f32 %v318, %v1449
        %v1543 = vadd.f32 %v319, %v1000
        %v1544 = vadd.f32 %v320, %v1452
        %v1545 = vadd.f32 %v321, %v1003
        %v1546 = vadd.f32 %v322, %v1455
        %v1547 = vadd.f32 %v323, %v1006
        %v1548 = vadd.f32 %v324, %v1458
        %v1549 = vadd.f32 %v325, %v1009
        %v1550 = vadd.f32 %v326, %v1461
        %v1551 = vadd.f32 %v327, %v1012
        %v1552 = vadd.f32 %v328, %v1464
        %v1553 = vadd.f32 %v329, %v1015
        %v1554 = vadd.f32 %v330, %v1467
        %v1555 = vadd.f32 %v331, %v1018
        %v1556 = vadd.f32 %v332, %v1470
        %v1557 = vadd.f32 %v333, %v1021
        %v1558 = vadd.f32 %v334, %v1473
        %v1559 = vadd.f32 %v335, %v1024
        %v1560 = vadd.f32 %v336, %v1476
        %v1561 = vadd.f32 %v337, %v1027
        %v1562 = vadd.f32 %v338, %v1479
        %v1563 = vadd.f32 %v339, %v1030
        %v1564 = vadd.f32 %v340, %v1482
        %v1565 = vadd.f32 %v341, %v1033
        %v1566 = vadd.f32 %v342, %v1485
        %v1567 = vadd.f32 %v343, %v1036
        %v1568 = vadd.f32 %v344, %v1488
        %v1569 = vadd.f32 %v345, %v1039
        %v1570 = vadd.f32 %v346, %v1491
        %v1571 = vadd.f32 %v347, %v1042
        %v1572 = vadd.f32 %v348, %v1494
        %v1573 = vadd.f32 %v349, %v1045
        %v1574 = vadd.f32 %v350, %v1497
        %v1575 = vadd.f32 %v351, %v1048
        %v1576 = vadd.f32 %v352, %v1500
        %v1577 = vadd.f32 %v353, %v1051
        %v1578 = vadd.f32 %v354, %v1503
        %v1579 = vadd.f32 %v355, %v1054
        %v1580 = vadd.f32 %v356, %v1506
        %v1581 = vadd.f32 %v357, %v1057
        %v1582 = vadd.f32 %v358, %v1509
        %v1583 = vadd.f32 %v359, %v1060
        %v1584 = vadd.f32 %v360, %v1512
        %v1585 = vadd.f32 %v361, %v1063
        %v1586 = vadd.f32 %v362, %v1515
        %v1587 = vadd.f32 %v363, %v1066
        %v1588 = vadd.f32 %v364, %v1518
        %v1589 = vadd.f32 %v365, %v1069
        %v1590 = vadd.f32 %v366, %v1521
        %v1591 = vadd.f32 %v367, %v1072
        %v1592 = vadd.f32 %v368, %v1524
        %v1593 = vadd.f32 %v369, %v1075
        %v1594 = vadd.f32 %v370, %v1527
        %v1595 = vadd.f32 %v371, %v1078
        %v1596 = vadd.f32 %v372, %v1530
        %v1597 = vadd.f32 %v373, %v1081
        %v1598 = vadd.f32 %v374, %v1533
        %1599 = vst [vmem:[#allocation2] sm:$0xff] %v1535
        %1600 = vst [vmem:[#allocation2 + $0x8] sm:$0xff] %v1536
        %1601 = vst [vmem:[#allocation2 + $0x10] sm:$0xff] %v1537
        %1602 = vst [vmem:[#allocation2 + $0x18] sm:$0xff] %v1538
        %1603 = vst [vmem:[#allocation2 + $0x20] sm:$0xff] %v1539
        %1604 = vst [vmem:[#allocation2 + $0x28] sm:$0xff] %v1540
        %1605 = vst [vmem:[#allocation2 + $0x30] sm:$0xff] %v1541
        %1606 = vst [vmem:[#allocation2 + $0x38] sm:$0xff] %v1542
        %1607 = vst [vmem:[#allocation2 + $0x40] sm:$0xff] %v1543
        %1608 = vst [vmem:[#allocation2 + $0x48] sm:$0xff] %v1544
        %1609 = vst [vmem:[#allocation2 + $0x50] sm:$0xff] %v1545
        %1610 = vst [vmem:[#allocation2 + $0x58] sm:$0xff] %v1546
        %1611 = vst [vmem:[#allocation2 + $0x60] sm:$0xff] %v1547
        %1612 = vst [vmem:[#allocation2 + $0x68] sm:$0xff] %v1548
        %1613 = vst [vmem:[#allocation2 + $0x70] sm:$0xff] %v1549
        %1614 = vst [vmem:[#allocation2 + $0x78] sm:$0xff] %v1550
        %1615 = vst [vmem:[#allocation2 + $0x80] sm:$0xff] %v1551
        %1616 = vst [vmem:[#allocation2 + $0x88] sm:$0xff] %v1552
        %1617 = vst [vmem:[#allocation2 + $0x90] sm:$0xff] %v1553
        %1618 = vst [vmem:[#allocation2 + $0x98] sm:$0xff] %v1554
        %1619 = vst [vmem:[#allocation2 + $0xa0] sm:$0xff] %v1555
        %1620 = vst [vmem:[#allocation2 + $0xa8] sm:$0xff] %v1556
        %1621 = vst [vmem:[#allocation2 + $0xb0] sm:$0xff] %v1557
        %1622 = vst [vmem:[#allocation2 + $0xb8] sm:$0xff] %v1558
        %1623 = vst [vmem:[#allocation2 + $0xc0] sm:$0xff] %v1559
        %1624 = vst [vmem:[#allocation2 + $0xc8] sm:$0xff] %v1560
        %1625 = vst [vmem:[#allocation2 + $0xd0] sm:$0xff] %v1561
        %1626 = vst [vmem:[#allocation2 + $0xd8] sm:$0xff] %v1562
        %1627 = vst [vmem:[#allocation2 + $0xe0] sm:$0xff] %v1563
        %1628 = vst [vmem:[#allocation2 + $0xe8] sm:$0xff] %v1564
        %1629 = vst [vmem:[#allocation2 + $0xf0] sm:$0xff] %v1565
        %1630 = vst [vmem:[#allocation2 + $0xf8] sm:$0xff] %v1566
        %1631 = vst [vmem:[#allocation2 + $0x100] sm:$0xff] %v1567
        %1632 = vst [vmem:[#allocation2 + $0x108] sm:$0xff] %v1568
        %1633 = vst [vmem:[#allocation2 + $0x110] sm:$0xff] %v1569
        %1634 = vst [vmem:[#allocation2 + $0x118] sm:$0xff] %v1570
        %1635 = vst [vmem:[#allocation2 + $0x120] sm:$0xff] %v1571
        %1636 = vst [vmem:[#allocation2 + $0x128] sm:$0xff] %v1572
        %1637 = vst [vmem:[#allocation2 + $0x130] sm:$0xff] %v1573
        %1638 = vst [vmem:[#allocation2 + $0x138] sm:$0xff] %v1574
        %1639 = vst [vmem:[#allocation2 + $0x140] sm:$0xff] %v1575
        %1640 = vst [vmem:[#allocation2 + $0x148] sm:$0xff] %v1576
        %1641 = vst [vmem:[#allocation2 + $0x150] sm:$0xff] %v1577
        %1642 = vst [vmem:[#allocation2 + $0x158] sm:$0xff] %v1578
        %1643 = vst [vmem:[#allocation2 + $0x160] sm:$0xff] %v1579
        %1644 = vst [vmem:[#allocation2 + $0x168] sm:$0xff] %v1580
        %1645 = vst [vmem:[#allocation2 + $0x170] sm:$0xff] %v1581
        %1646 = vst [vmem:[#allocation2 + $0x178] sm:$0xff] %v1582
        %1647 = vst [vmem:[#allocation2 + $0x180] sm:$0xff] %v1583
        %1648 = vst [vmem:[#allocation2 + $0x188] sm:$0xff] %v1584
        %1649 = vst [vmem:[#allocation2 + $0x190] sm:$0xff] %v1585
        %1650 = vst [vmem:[#allocation2 + $0x198] sm:$0xff] %v1586
        %1651 = vst [vmem:[#allocation2 + $0x1a0] sm:$0xff] %v1587
        %1652 = vst [vmem:[#allocation2 + $0x1a8] sm:$0xff] %v1588
        %1653 = vst [vmem:[#allocation2 + $0x1b0] sm:$0xff] %v1589
        %1654 = vst [vmem:[#allocation2 + $0x1b8] sm:$0xff] %v1590
        %1655 = vst [vmem:[#allocation2 + $0x1c0] sm:$0xff] %v1591
        %1656 = vst [vmem:[#allocation2 + $0x1c8] sm:$0xff] %v1592
        %1657 = vst [vmem:[#allocation2 + $0x1d0] sm:$0xff] %v1593
        %1658 = vst [vmem:[#allocation2 + $0x1d8] sm:$0xff] %v1594
        %1659 = vst [vmem:[#allocation2 + $0x1e0] sm:$0xff] %v1595
        %1660 = vst [vmem:[#allocation2 + $0x1e8] sm:$0xff] %v1596
        %1661 = vst [vmem:[#allocation2 + $0x1f0] sm:$0xff] %v1597
        %1662 = vst [vmem:[#allocation2 + $0x1f8] sm:$0xff] %v1598
        %p1663 = scmp.eq.s32.totalorder %s29, 1
        // Predicated region
        $region41: #{tpu_custom_call.1} parent=27 // pred_check
          %p1664 = pneg %p1663
        $region42: #{tpu_custom_call.1} parent=27 // pred_check_branch
          %1666 = sbr.rel (%p1664) target = $region44
        $region43: #{tpu_custom_call.1} parent=27 // pred_region
          %v1667 = vld [vmem:[#allocation2] sm:$0xff]
          %v1668 = vld [vmem:[#allocation2 + $0x8] sm:$0xff]
          %v1669 = vld [vmem:[#allocation2 + $0x10] sm:$0xff]
          %v1670 = vld [vmem:[#allocation2 + $0x18] sm:$0xff]
          %v1671 = vld [vmem:[#allocation2 + $0x20] sm:$0xff]
          %v1672 = vld [vmem:[#allocation2 + $0x28] sm:$0xff]
          %v1673 = vld [vmem:[#allocation2 + $0x30] sm:$0xff]
          %v1674 = vld [vmem:[#allocation2 + $0x38] sm:$0xff]
          %v1675 = vld [vmem:[#allocation2 + $0x40] sm:$0xff]
          %v1676 = vld [vmem:[#allocation2 + $0x48] sm:$0xff]
          %v1677 = vld [vmem:[#allocation2 + $0x50] sm:$0xff]
          %v1678 = vld [vmem:[#allocation2 + $0x58] sm:$0xff]
          %v1679 = vld [vmem:[#allocation2 + $0x60] sm:$0xff]
          %v1680 = vld [vmem:[#allocation2 + $0x68] sm:$0xff]
          %v1681 = vld [vmem:[#allocation2 + $0x70] sm:$0xff]
          %v1682 = vld [vmem:[#allocation2 + $0x78] sm:$0xff]
          %v1683 = vld [vmem:[#allocation2 + $0x80] sm:$0xff]
          %v1684 = vld [vmem:[#allocation2 + $0x88] sm:$0xff]
          %v1685 = vld [vmem:[#allocation2 + $0x90] sm:$0xff]
          %v1686 = vld [vmem:[#allocation2 + $0x98] sm:$0xff]
          %v1687 = vld [vmem:[#allocation2 + $0xa0] sm:$0xff]
          %v1688 = vld [vmem:[#allocation2 + $0xa8] sm:$0xff]
          %v1689 = vld [vmem:[#allocation2 + $0xb0] sm:$0xff]
          %v1690 = vld [vmem:[#allocation2 + $0xb8] sm:$0xff]
          %v1691 = vld [vmem:[#allocation2 + $0xc0] sm:$0xff]
          %v1692 = vld [vmem:[#allocation2 + $0xc8] sm:$0xff]
          %v1693 = vld [vmem:[#allocation2 + $0xd0] sm:$0xff]
          %v1694 = vld [vmem:[#allocation2 + $0xd8] sm:$0xff]
          %v1695 = vld [vmem:[#allocation2 + $0xe0] sm:$0xff]
          %v1696 = vld [vmem:[#allocation2 + $0xe8] sm:$0xff]
          %v1697 = vld [vmem:[#allocation2 + $0xf0] sm:$0xff]
          %v1698 = vld [vmem:[#allocation2 + $0xf8] sm:$0xff]
          %v1699 = vld [vmem:[#allocation2 + $0x100] sm:$0xff]
          %v1700 = vld [vmem:[#allocation2 + $0x108] sm:$0xff]
          %v1701 = vld [vmem:[#allocation2 + $0x110] sm:$0xff]
          %v1702 = vld [vmem:[#allocation2 + $0x118] sm:$0xff]
          %v1703 = vld [vmem:[#allocation2 + $0x120] sm:$0xff]
          %v1704 = vld [vmem:[#allocation2 + $0x128] sm:$0xff]
          %v1705 = vld [vmem:[#allocation2 + $0x130] sm:$0xff]
          %v1706 = vld [vmem:[#allocation2 + $0x138] sm:$0xff]
          %v1707 = vld [vmem:[#allocation2 + $0x140] sm:$0xff]
          %v1708 = vld [vmem:[#allocation2 + $0x148] sm:$0xff]
          %v1709 = vld [vmem:[#allocation2 + $0x150] sm:$0xff]
          %v1710 = vld [vmem:[#allocation2 + $0x158] sm:$0xff]
          %v1711 = vld [vmem:[#allocation2 + $0x160] sm:$0xff]
          %v1712 = vld [vmem:[#allocation2 + $0x168] sm:$0xff]
          %v1713 = vld [vmem:[#allocation2 + $0x170] sm:$0xff]
          %v1714 = vld [vmem:[#allocation2 + $0x178] sm:$0xff]
          %v1715 = vld [vmem:[#allocation2 + $0x180] sm:$0xff]
          %v1716 = vld [vmem:[#allocation2 + $0x188] sm:$0xff]
          %v1717 = vld [vmem:[#allocation2 + $0x190] sm:$0xff]
          %v1718 = vld [vmem:[#allocation2 + $0x198] sm:$0xff]
          %v1719 = vld [vmem:[#allocation2 + $0x1a0] sm:$0xff]
          %v1720 = vld [vmem:[#allocation2 + $0x1a8] sm:$0xff]
          %v1721 = vld [vmem:[#allocation2 + $0x1b0] sm:$0xff]
          %v1722 = vld [vmem:[#allocation2 + $0x1b8] sm:$0xff]
          %v1723 = vld [vmem:[#allocation2 + $0x1c0] sm:$0xff]
          %v1724 = vld [vmem:[#allocation2 + $0x1c8] sm:$0xff]
          %v1725 = vld [vmem:[#allocation2 + $0x1d0] sm:$0xff]
          %v1726 = vld [vmem:[#allocation2 + $0x1d8] sm:$0xff]
          %v1727 = vld [vmem:[#allocation2 + $0x1e0] sm:$0xff]
          %v1728 = vld [vmem:[#allocation2 + $0x1e8] sm:$0xff]
          %v1729 = vld [vmem:[#allocation2 + $0x1f0] sm:$0xff]
          %v1730 = vld [vmem:[#allocation2 + $0x1f8] sm:$0xff]
          %1731 = vst [vmem:[%s236] sm:$0xff] %v1667
          %1732 = vst [vmem:[%s236 + $0x8] sm:$0xff] %v1668
          %1733 = vst [vmem:[%s236 + $0x10] sm:$0xff] %v1669
          %1734 = vst [vmem:[%s236 + $0x18] sm:$0xff] %v1670
          %1735 = vst [vmem:[%s236 + $0x20] sm:$0xff] %v1671
          %1736 = vst [vmem:[%s236 + $0x28] sm:$0xff] %v1672
          %1737 = vst [vmem:[%s236 + $0x30] sm:$0xff] %v1673
          %1738 = vst [vmem:[%s236 + $0x38] sm:$0xff] %v1674
          %1739 = vst [vmem:[%s236 + $0x40] sm:$0xff] %v1675
          %1740 = vst [vmem:[%s236 + $0x48] sm:$0xff] %v1676
          %1741 = vst [vmem:[%s236 + $0x50] sm:$0xff] %v1677
          %1742 = vst [vmem:[%s236 + $0x58] sm:$0xff] %v1678
          %1743 = vst [vmem:[%s236 + $0x60] sm:$0xff] %v1679
          %1744 = vst [vmem:[%s236 + $0x68] sm:$0xff] %v1680
          %1745 = vst [vmem:[%s236 + $0x70] sm:$0xff] %v1681
          %1746 = vst [vmem:[%s236 + $0x78] sm:$0xff] %v1682
          %1747 = vst [vmem:[%s236 + $0x80] sm:$0xff] %v1683
          %1748 = vst [vmem:[%s236 + $0x88] sm:$0xff] %v1684
          %1749 = vst [vmem:[%s236 + $0x90] sm:$0xff] %v1685
          %1750 = vst [vmem:[%s236 + $0x98] sm:$0xff] %v1686
          %1751 = vst [vmem:[%s236 + $0xa0] sm:$0xff] %v1687
          %1752 = vst [vmem:[%s236 + $0xa8] sm:$0xff] %v1688
          %1753 = vst [vmem:[%s236 + $0xb0] sm:$0xff] %v1689
          %1754 = vst [vmem:[%s236 + $0xb8] sm:$0xff] %v1690
          %1755 = vst [vmem:[%s236 + $0xc0] sm:$0xff] %v1691
          %1756 = vst [vmem:[%s236 + $0xc8] sm:$0xff] %v1692
          %1757 = vst [vmem:[%s236 + $0xd0] sm:$0xff] %v1693
          %1758 = vst [vmem:[%s236 + $0xd8] sm:$0xff] %v1694
          %1759 = vst [vmem:[%s236 + $0xe0] sm:$0xff] %v1695
          %1760 = vst [vmem:[%s236 + $0xe8] sm:$0xff] %v1696
          %1761 = vst [vmem:[%s236 + $0xf0] sm:$0xff] %v1697
          %1762 = vst [vmem:[%s236 + $0xf8] sm:$0xff] %v1698
          %1763 = vst [vmem:[%s236 + $0x100] sm:$0xff] %v1699
          %1764 = vst [vmem:[%s236 + $0x108] sm:$0xff] %v1700
          %1765 = vst [vmem:[%s236 + $0x110] sm:$0xff] %v1701
          %1766 = vst [vmem:[%s236 + $0x118] sm:$0xff] %v1702
          %1767 = vst [vmem:[%s236 + $0x120] sm:$0xff] %v1703
          %1768 = vst [vmem:[%s236 + $0x128] sm:$0xff] %v1704
          %1769 = vst [vmem:[%s236 + $0x130] sm:$0xff] %v1705
          %1770 = vst [vmem:[%s236 + $0x138] sm:$0xff] %v1706
          %1771 = vst [vmem:[%s236 + $0x140] sm:$0xff] %v1707
          %1772 = vst [vmem:[%s236 + $0x148] sm:$0xff] %v1708
          %1773 = vst [vmem:[%s236 + $0x150] sm:$0xff] %v1709
          %1774 = vst [vmem:[%s236 + $0x158] sm:$0xff] %v1710
          %1775 = vst [vmem:[%s236 + $0x160] sm:$0xff] %v1711
          %1776 = vst [vmem:[%s236 + $0x168] sm:$0xff] %v1712
          %1777 = vst [vmem:[%s236 + $0x170] sm:$0xff] %v1713
          %1778 = vst [vmem:[%s236 + $0x178] sm:$0xff] %v1714
          %1779 = vst [vmem:[%s236 + $0x180] sm:$0xff] %v1715
          %1780 = vst [vmem:[%s236 + $0x188] sm:$0xff] %v1716
          %1781 = vst [vmem:[%s236 + $0x190] sm:$0xff] %v1717
          %1782 = vst [vmem:[%s236 + $0x198] sm:$0xff] %v1718
          %1783 = vst [vmem:[%s236 + $0x1a0] sm:$0xff] %v1719
          %1784 = vst [vmem:[%s236 + $0x1a8] sm:$0xff] %v1720
          %1785 = vst [vmem:[%s236 + $0x1b0] sm:$0xff] %v1721
          %1786 = vst [vmem:[%s236 + $0x1b8] sm:$0xff] %v1722
          %1787 = vst [vmem:[%s236 + $0x1c0] sm:$0xff] %v1723
          %1788 = vst [vmem:[%s236 + $0x1c8] sm:$0xff] %v1724
          %1789 = vst [vmem:[%s236 + $0x1d0] sm:$0xff] %v1725
          %1790 = vst [vmem:[%s236 + $0x1d8] sm:$0xff] %v1726
          %1791 = vst [vmem:[%s236 + $0x1e0] sm:$0xff] %v1727
          %1792 = vst [vmem:[%s236 + $0x1e8] sm:$0xff] %v1728
          %1793 = vst [vmem:[%s236 + $0x1f0] sm:$0xff] %v1729
          %1794 = vst [vmem:[%s236 + $0x1f8] sm:$0xff] %v1730
        $region44: #{tpu_custom_call.1} parent=27 // pred_fallthru
          _
        %s1795 = sand.u32 %s107, 1
        %s1796 = scalar_lea.sflag [#allocation5], %s1795
        %s1797 = sand.u32 %s107, 1
        %s1798 = smul.addr %s1797, 512
        %s1799 = scalar_lea.vmem [#allocation8], %s1798
        // Predicated region
        $region45: #{tpu_custom_call.1} parent=27 // pred_check
          %p1800 = pneg %p117
        $region46: #{tpu_custom_call.1} parent=27 // pred_check_branch
          %1802 = sbr.rel (%p1800) target = $region48
        $region47: #{tpu_custom_call.1} parent=27 // pred_region
          %s1803 = smul.u32 32, %s27
          %s1804 = smul.u32 2, %s28
          %1806 = vsyncadd %s1796, 0
          %s1807 = smul.addr %s1803, 4
          %s1808 = sadd.s32 %s1804, %s1807
          %s1809 = smul.addr %s1808, 8
          %s1810 = scalar_lea.hbm %s2, %s1809
          %s1811 = sshll.u32 %s1799, 4
          %s1812 = int_to_ptr.vmem [resolvable:$true] %s1811
          %s1813 = sshll.u32 %s1810, 4
          %s1814 = int_to_ptr.hbm [resolvable:$true] %s1813
          %1819 = dma.vmem_to_hbm [thread:$0]  %s1812, 8192, %s1814, %s1796, 256, 512, 16
        $region48: #{tpu_custom_call.1} parent=27 // pred_fallthru
          _
      $region28: #{tpu_custom_call.1} parent=5 // pred_fallthru
        _
      %p1820 = scmp.le.s32.totalorder 2, %s17
      // Predicated region
      $region49: #{tpu_custom_call.1} parent=5 // pred_check
        %p1821 = pneg %p1820
      $region50: #{tpu_custom_call.1} parent=5 // pred_check_branch
        %1823 = sbr.rel (%p1821) target = $region52
      $region51: #{tpu_custom_call.1} parent=5 // pred_region
        %s1824 = ssub.s32 %s17, 2
        // Predicated region
        $region53: #{tpu_custom_call.1} parent=51 // pred_check
          %p1825 = pneg %p123
        $region54: #{tpu_custom_call.1} parent=51 // pred_check_branch
          %1827 = sbr.rel (%p1825) target = $region56
        $region55: #{tpu_custom_call.1} parent=51 // pred_region
          %s1828 = sand.u32 %s108, 1
          %s1829 = scalar_lea.sflag [#allocation5], %s1828
          %s1830 = sand.u32 %s108, 1
          %s1831 = smul.addr %s1830, 512
          %s1832 = scalar_lea.vmem [#allocation8], %s1831
          %1834 = dma.done %s1829, 8192
        $region56: #{tpu_custom_call.1} parent=51 // pred_fallthru
          _
      $region52: #{tpu_custom_call.1} parent=5 // pred_fallthru
        _
    $region6: #{tpu_custom_call.1} parent=1 // loop_footer
      %s21 = sadd.s32 1, %s17
    $region7: #{tpu_custom_call.1} parent=1 // loop_footer_branch
      %16 = sbr.rel target = $region3
    $region8: #{tpu_custom_call.1} parent=1 // loop_exit
      _
    %1835 = vsyncpa [#allocation4], 1
    %s1836 = scalar_lea.sflag [#allocation4], 1
    %1837 = vsyncpa %s1836, 1
    %1838 = vsyncpa [#allocation7], 1
    %s1839 = scalar_lea.sflag [#allocation7], 1
    %1840 = vsyncpa %s1839, 1
    %1841 = vsyncpa [#allocation5], 1
    %s1842 = scalar_lea.sflag [#allocation5], 1
    %1843 = vsyncpa %s1842, 1

</llo_original>
